<compile_context>
chip_gen: v6e
topology: v6e:2x2x1
jax: 0.10.0
libtpu: 0.0.40
codegen_flags: <defaults>
</compile_context>

<pallas_src>
import functools

import jax
import jax.numpy as jnp
from jax.experimental import pallas as pl
from jax.experimental.pallas import tpu as pltpu


def _round_up(x, m):
    return ((x + m - 1) // m) * m


def linear_relu_kernel(x_ref, w_ref, b_ref, o_ref):
    """One (tm, tn) output tile; full-K dot, bias add, ReLU, single write.

    x_ref: (tm, Kp) f32, w_ref: (Kp, tn) bf16 (up-cast in VMEM),
    b_ref: (1, tn) f32, o_ref: (tm, tn) f32.
    """
    w = w_ref[...].astype(jnp.float32)
    acc = jnp.dot(
        x_ref[...],
        w,
        preferred_element_type=jnp.float32,
        precision=jax.lax.Precision.HIGHEST,
    )
    o_ref[...] = jnp.maximum(acc + b_ref[...], 0.0).astype(o_ref.dtype)


def _pick_tn(Np):
    """Largest lane-aligned N tile <= 512 that divides Np, preferring >=2
    N-grid steps so both v7x TensorCores get pipelined work."""
    cap = min(512, Np)
    if Np > 128:
        cap = min(cap, Np // 2)
    tn = max((cap // 128) * 128, 128)
    while Np % tn != 0:
        tn -= 128
    return tn


@functools.partial(jax.jit, static_argnames=("tm", "tn"))
def _linear_relu_padded(x, w, b, *, tm, tn):
    """y = relu(x @ w + b) on pre-padded operands.

    x: (Bp, Kp) f32, w: (Kp, Np) bf16, b: (1, Np) f32 -> (Bp, Np) f32
    Bp % tm == 0, Kp % 128 == 0, Np % tn == 0.
    """
    Bp, Kp = x.shape
    Kw, Np = w.shape
    assert Kp == Kw and b.shape == (1, Np)
    assert Bp % tm == 0 and Np % tn == 0 and Kp % 128 == 0

    # N axis outermost: the weight slab is resident across all batch blocks
    # of a given N column, so weights cross HBM exactly once per layer.
    grid = (Np // tn, Bp // tm)

    return pl.pallas_call(
        linear_relu_kernel,
        out_shape=jax.ShapeDtypeStruct((Bp, Np), jnp.float32),
        grid_spec=pltpu.PrefetchScalarGridSpec(
            num_scalar_prefetch=0,
            grid=grid,
            in_specs=[
                # x: full-K row block, depends only on the inner batch axis.
                pl.BlockSpec((tm, Kp), lambda j, i: (i, 0)),
                # w: full-K bf16 column slab, depends only on the outer N axis.
                pl.BlockSpec((Kp, tn), lambda j, i: (0, j)),
                # bias: one f32 row per N tile.
                pl.BlockSpec((1, tn), lambda j, i: (0, j)),
            ],
            out_specs=pl.BlockSpec((tm, tn), lambda j, i: (i, j)),
        ),
        compiler_params=pltpu.CompilerParams(
            dimension_semantics=("parallel", "parallel"),
            # bf16 2048x512 weight tiles (2 MiB) + f32 x/out tiles, double
            # buffered, stay far under v7x's 64 MiB physical VMEM.
            vmem_limit_bytes=48 * 1024 * 1024,
        ),
    )(x, w, b)


# ----------------------------- parameters ---------------------------------


def init_linear_params(key, in_dim, out_dim):
    """Deterministic init mimicking PyTorch nn.Linear defaults
    (uniform in [-1/sqrt(in_dim), 1/sqrt(in_dim)])."""
    kw, kb = jax.random.split(key)
    bound = 1.0 / jnp.sqrt(jnp.float32(in_dim))
    # Stored as (in_dim, out_dim): transpose of PyTorch's (out, in).
    w = jax.random.uniform(kw, (in_dim, out_dim), jnp.float32, -bound, bound)
    b = jax.random.uniform(kb, (out_dim,), jnp.float32, -bound, bound)
    return w, b


def make_encoder_params(key, input_dim, output_dim):
    dims = [input_dim, 1000, 2000, 2000, output_dim]
    keys = jax.random.split(key, len(dims) - 1)
    return [
        init_linear_params(keys[i], dims[i], dims[i + 1])
        for i in range(len(dims) - 1)
    ]


def prepare_params(params):
    """Zero-pad weights/biases to lane-aligned shapes and cast weights to
    bf16 ONCE (hoisted out of the hot path).  Padding is semantically inert:
    padded K rows meet zero activation columns, padded N columns get zero
    weight+bias -> ReLU(0)=0."""
    prepared = []
    for w, b in params:
        K, N = w.shape
        Kp = _round_up(K, 128)
        Np = _round_up(N, 128)
        wp = (
            jnp.zeros((Kp, Np), jnp.float32).at[:K, :N].set(w)
        ).astype(jnp.bfloat16)
        bp = jnp.zeros((1, Np), jnp.float32).at[0, :N].set(b)
        prepared.append((wp, bp))
    return prepared


# ------------------------------ forward ------------------------------------


def encoder_forward(prepared_params, x, output_dim):
    """Pallas-backed forward pass of Encoder.

    x: (B, input_dim) f32 -> (B, output_dim) f32
    Activations stay padded (f32) between layers; sliced only at the end.
    """
    B, D = x.shape
    Bp8 = _round_up(B, 8)
    tm = min(Bp8, 256)          # full MXU-height LHS tiles at larger batches
    Bp = _round_up(Bp8, tm)

    Kp0 = prepared_params[0][0].shape[0]
    h = jnp.zeros((Bp, Kp0), jnp.float32).at[:B, :D].set(x)

    for wp, bp in prepared_params:
        Np = wp.shape[1]
        h = _linear_relu_padded(h, wp, bp, tm=tm, tn=_pick_tn(Np))

    return h[:B, :output_dim]


def encoder_reference(params, x):
    """Pure-JAX reference for validation.  Uses the same bf16-rounded weights
    the kernel streams (bias and accumulation in f32)."""
    h = x
    for w, b in params:
        w_q = w.astype(jnp.bfloat16).astype(jnp.float32)
        h = jnp.maximum(
            jnp.dot(h, w_q, precision=jax.lax.Precision.HIGHEST) + b, 0.0
        )
    return h


if __name__ == "__main__":
    input_dim = 32
    output_dim = 64
    batch = 4  # exercises batch padding (4 -> 8 rows)

    key = jax.random.PRNGKey(0)
    k_params, k_x = jax.random.split(key)

    params = make_encoder_params(k_params, input_dim, output_dim)
    prepared = prepare_params(params)
    x = jax.random.normal(k_x, (batch, input_dim), jnp.float32)

    y = encoder_forward(prepared, x, output_dim)
    y = jax.block_until_ready(y)

    y_ref = encoder_reference(params, x)
    assert y.shape == (batch, output_dim), y.shape
    assert jnp.allclose(y, y_ref, atol=2e-3, rtol=2e-3), (
        float(jnp.max(jnp.abs(y - y_ref)))
    )

    print("KERNEL_OK")
</pallas_src>

<mosaic_0001>
module attributes {stable_mosaic.version = 11 : i64} {
  func.func @linear_relu_kernel(%arg0: i32, %arg1: i32, %arg2: memref<8x128xf32, #tpu.memory_space<vmem>>, %arg3: memref<128x512xbf16, #tpu.memory_space<vmem>>, %arg4: memref<1x512xf32, #tpu.memory_space<vmem>>, %arg5: memref<8x512xf32, #tpu.memory_space<vmem>>) attributes {dimension_semantics = [#tpu.dimension_semantics<parallel>, #tpu.dimension_semantics<parallel>], iteration_bounds = array<i64: 2, 1>, scalar_prefetch = 0 : i64, scratch_operands = 0 : i64, tpu.core_type = #tpu.core_type<tc>, window_params = [{transform_indices = @transform_0, window_bounds = array<i64: 8, 128>}, {transform_indices = @transform_1, window_bounds = array<i64: 128, 512>}, {transform_indices = @transform_2, window_bounds = array<i64: 1, 512>}, {transform_indices = @transform_3, window_bounds = array<i64: 8, 512>}]} {
    %c0 = arith.constant 0 : index
    %c0_0 = arith.constant 0 : index
    %0 = vector.load %arg3[%c0, %c0_0] : memref<128x512xbf16, #tpu.memory_space<vmem>>, vector<128x512xbf16>
    %1 = arith.extf %0 : vector<128x512xbf16> to vector<128x512xf32>
    %c0_1 = arith.constant 0 : index
    %c0_2 = arith.constant 0 : index
    %2 = vector.load %arg2[%c0_1, %c0_2] : memref<8x128xf32, #tpu.memory_space<vmem>>, vector<8x128xf32>
    %cst = arith.constant dense<0.000000e+00> : vector<8x512xf32>
    %3 = tpu.matmul %2, %1, %cst {dimension_numbers = #tpu.dot_dimension_numbers<[1], [0], [0], [1], [0, 0, 1, 1], [], []>, precision = #tpu.contract_precision<fp32>} : vector<8x128xf32>, vector<128x512xf32>, vector<8x512xf32> -> vector<8x512xf32>
    %c0_3 = arith.constant 0 : index
    %c0_4 = arith.constant 0 : index
    %4 = vector.load %arg4[%c0_3, %c0_4] : memref<1x512xf32, #tpu.memory_space<vmem>>, vector<1x512xf32>
    %5 = vector.broadcast %4 : vector<1x512xf32> to vector<8x512xf32>
    %6 = arith.addf %3, %5 : vector<8x512xf32>
    %cst_5 = arith.constant 0.000000e+00 : f32
    %7 = vector.broadcast %cst_5 : f32 to vector<8x512xf32>
    %8 = arith.maximumf %6, %7 : vector<8x512xf32>
    %c0_6 = arith.constant 0 : index
    %c0_7 = arith.constant 0 : index
    %9 = vector.load %arg5[%c0_6, %c0_7] : memref<8x512xf32, #tpu.memory_space<vmem>>, vector<8x512xf32>
    tpu.vector_store %arg5[%c0_6, %c0_7], %8 {strides = array<i32>} : memref<8x512xf32, #tpu.memory_space<vmem>>, vector<8x512xf32>,
    return
  }
  func.func @transform_0(%arg0: i32, %arg1: i32) -> (i32, i32) {
    %c0_i32 = arith.constant 0 : i32
    %c0_i32_0 = arith.constant 0 : i32
    return %arg1, %c0_i32 : i32, i32
  }
  func.func @transform_1(%arg0: i32, %arg1: i32) -> (i32, i32) {
    %c0_i32 = arith.constant 0 : i32
    %c0_i32_0 = arith.constant 0 : i32
    return %c0_i32, %arg0 : i32, i32
  }
  func.func @transform_2(%arg0: i32, %arg1: i32) -> (i32, i32) {
    %c0_i32 = arith.constant 0 : i32
    %c0_i32_0 = arith.constant 0 : i32
    return %c0_i32, %arg0 : i32, i32
  }
  func.func @transform_3(%arg0: i32, %arg1: i32) -> (i32, i32) {
    %c0_i32 = arith.constant 0 : i32
    return %arg1, %arg0 : i32, i32
  }
}

</mosaic_0001>

<llo_original>
// kernel: _linear_relu_padded.1
$region0: #{_linear_relu_padded.1}
  #allocation0 [shape = 'u32[]', space=smem, size = 0x4, offset = 0x4, fixed_abs, tag = 'smem constant byte address 0x4 - core index']
  #allocation1 [shape = 'u32[144,128]{1,0:T(1,128)}', space=vmem, size = 0x12000, scoped, tag = 'internal scratch']
  %s0 = inlined_call_operand.hbm [shape: f32[8,128], index: 0, kind: input, shape index: {}]
  %s1 = inlined_call_operand.hbm [shape: bf16[128,1024], index: 1, kind: input, shape index: {}]
  %s2 = inlined_call_operand.hbm [shape: f32[1,1024], index: 2, kind: input, shape index: {}]
  %s3 = inlined_call_operand.hbm [shape: f32[8,1024], index: 3, kind: output, shape index: {}]
  %s4 = sld [smem:[#allocation0]]
  $region57: #{_linear_relu_padded.1} parent=0
    _
  %s6 = ssub.s32 1, %s4
  %s7 = scalar_select 0, %s6, %s4
  $region1: #{_linear_relu_padded.1} parent=0
    #allocation2 [shape = 'u8[4096]{0}', space=vmem, size = 0x1000, scoped, tag = 'input window, operand 0, single buffered']
    #allocation3 [shape = 's32[2]{0}', space=sflag, size = 0x8, scoped, tag = 'scoped memory for _linear_relu_padded.1']
    #allocation4 [shape = 's32[2]{0}', space=sflag, size = 0x8, scoped, tag = 'scoped memory for _linear_relu_padded.1']
    #allocation5 [shape = 'u8[262144]{0}', space=vmem, size = 0x40000, scoped, tag = 'input window, operand 1']
    #allocation6 [shape = 's32[2]{0}', space=sflag, size = 0x8, scoped, tag = 'scoped memory for _linear_relu_padded.1']
    #allocation7 [shape = 'u8[4096]{0}', space=vmem, size = 0x1000, scoped, tag = 'input window, operand 2']
    #allocation8 [shape = 'u8[32768]{0}', space=vmem, size = 0x8000, scoped, tag = 'output window, operand 0']
    %8 = vsyncpa [#allocation3], 0
    %9 = vsyncpa [#allocation6], 0
    %s10 = scalar_lea.sflag [#allocation6], 1
    %11 = vsyncpa %s10, 0
    %12 = vsyncpa [#allocation4], 0
    %s13 = scalar_lea.sflag [#allocation4], 1
    %14 = vsyncpa %s13, 0
    loop: start=0, step=1, limit=4
    $region2: #{_linear_relu_padded.1} parent=1 // loop_pre_header
      _
    $region3: #{_linear_relu_padded.1} parent=1 // loop_header
      %s16 = sphi 0, %s20
      %p17 = scmp.ge.s32.totalorder %s16, 4
      %s23 = sphi 0, %s35
      %s24 = sphi 0, %s31
      %s25 = sphi 0, %s23
      %s26 = sphi 0, %s24
      %s27 = sphi 0, %s25
      %s28 = sphi 0, %s26
      %s38 = sphi 0, %s40
      %s41 = sphi 0, %s38
      %s42 = sphi 0, %s41
      %s58 = sphi 0, %s42
      %s64 = sphi 0, %s66
      %s67 = sphi 0, %s64
      %s68 = sphi 0, %s67
      %s84 = sphi 0, %s68
      %s90 = sphi 0, %s92
      %s93 = sphi 0, %s90
      %s94 = sphi 0, %s93
      %s110 = sphi 0, %s94
      %s118 = sphi 0, %s120
      %s121 = sphi 0, %s118
      %s122 = sphi 0, %s121
      %s138 = sphi 0, %s122
    $region4: #{_linear_relu_padded.1} parent=1 // loop_header_branch
      %19 = sbr.rel (%p17) target = $region8
    $region5: #{_linear_relu_padded.1} parent=1 // loop_body
      %s21 = ssub.s32 %s16, 1
      %s22 = ssub.s32 %s16, 2
      %s29 = sadd.s32 1, %s24
      %p30 = scmp.ge.s32.totalorder %s29, 1
      %s31 = scalar_select %p30, 0, %s29
      %s32 = sadd.s32 1, %s23
      %s33 = scalar_select %p30, %s32, %s23
      %p34 = scmp.ge.s32.totalorder %s33, 2
      %s35 = scalar_select %p34, 0, %s33
      %s36 = ssub.s32 %s24, %s31
      %p37 = scmp.eq.s32.totalorder %s36, 0
      %s39 = sadd.s32 %s38, 1
      %s40 = scalar_select %p37, %s38, %s39
      %p43 = pneg %p37
      %p44 = scmp.eq.s32.totalorder %s16, 1
      %p45 = por %p43, %p44
      %p46 = scmp.ne.s32.totalorder %s38, %s41
      %p47 = scmp.eq.s32.totalorder %s16, 0
      %p48 = por %p46, %p47
      %p49 = scmp.ne.s32.totalorder %s38, %s41
      %p50 = scmp.eq.s32.totalorder %s21, 1
      %p51 = por %p49, %p50
      %p52 = scmp.ne.s32.totalorder %s41, %s42
      %p53 = scmp.eq.s32.totalorder %s21, 0
      %p54 = por %p52, %p53
      %p55 = scmp.ne.s32.totalorder %s41, %s42
      %p56 = scmp.eq.s32.totalorder %s22, 1
      %p57 = por %p55, %p56
      %p59 = scmp.ne.s32.totalorder %s42, %s58
      %p60 = scmp.eq.s32.totalorder %s22, 0
      %p61 = por %p59, %p60
      %s62 = ssub.s32 %s23, %s35
      %p63 = scmp.eq.s32.totalorder %s62, 0
      %s65 = sadd.s32 %s64, 1
      %s66 = scalar_select %p63, %s64, %s65
      %p69 = pneg %p63
      %p70 = scmp.eq.s32.totalorder %s16, 1
      %p71 = por %p69, %p70
      %p72 = scmp.ne.s32.totalorder %s64, %s67
      %p73 = scmp.eq.s32.totalorder %s16, 0
      %p74 = por %p72, %p73
      %p75 = scmp.ne.s32.totalorder %s64, %s67
      %p76 = scmp.eq.s32.totalorder %s21, 1
      %p77 = por %p75, %p76
      %p78 = scmp.ne.s32.totalorder %s67, %s68
      %p79 = scmp.eq.s32.totalorder %s21, 0
      %p80 = por %p78, %p79
      %p81 = scmp.ne.s32.totalorder %s67, %s68
      %p82 = scmp.eq.s32.totalorder %s22, 1
      %p83 = por %p81, %p82
      %p85 = scmp.ne.s32.totalorder %s68, %s84
      %p86 = scmp.eq.s32.totalorder %s22, 0
      %p87 = por %p85, %p86
      %s88 = ssub.s32 %s23, %s35
      %p89 = scmp.eq.s32.totalorder %s88, 0
      %s91 = sadd.s32 %s90, 1
      %s92 = scalar_select %p89, %s90, %s91
      %p95 = pneg %p89
      %p96 = scmp.eq.s32.totalorder %s16, 1
      %p97 = por %p95, %p96
      %p98 = scmp.ne.s32.totalorder %s90, %s93
      %p99 = scmp.eq.s32.totalorder %s16, 0
      %p100 = por %p98, %p99
      %p101 = scmp.ne.s32.totalorder %s90, %s93
      %p102 = scmp.eq.s32.totalorder %s21, 1
      %p103 = por %p101, %p102
      %p104 = scmp.ne.s32.totalorder %s93, %s94
      %p105 = scmp.eq.s32.totalorder %s21, 0
      %p106 = por %p104, %p105
      %p107 = scmp.ne.s32.totalorder %s93, %s94
      %p108 = scmp.eq.s32.totalorder %s22, 1
      %p109 = por %p107, %p108
      %p111 = scmp.ne.s32.totalorder %s94, %s110
      %p112 = scmp.eq.s32.totalorder %s22, 0
      %p113 = por %p111, %p112
      %s114 = ssub.s32 %s24, %s31
      %s115 = ssub.s32 %s23, %s35
      %s116 = sor.u32 %s114, %s115
      %p117 = scmp.eq.s32.totalorder %s116, 0
      %s119 = sadd.s32 %s118, 1
      %s120 = scalar_select %p117, %s118, %s119
      %p123 = pneg %p117
      %p124 = scmp.eq.s32.totalorder %s16, 1
      %p125 = por %p123, %p124
      %p126 = scmp.ne.s32.totalorder %s118, %s121
      %p127 = scmp.eq.s32.totalorder %s16, 0
      %p128 = por %p126, %p127
      %p129 = scmp.ne.s32.totalorder %s118, %s121
      %p130 = scmp.eq.s32.totalorder %s21, 1
      %p131 = por %p129, %p130
      %p132 = scmp.ne.s32.totalorder %s121, %s122
      %p133 = scmp.eq.s32.totalorder %s21, 0
      %p134 = por %p132, %p133
      %p135 = scmp.ne.s32.totalorder %s121, %s122
      %p136 = scmp.eq.s32.totalorder %s22, 1
      %p137 = por %p135, %p136
      %p139 = scmp.ne.s32.totalorder %s122, %s138
      %p140 = scmp.eq.s32.totalorder %s22, 0
      %p141 = por %p139, %p140
      %p142 = scmp.le.s32.totalorder 1, %s16
      %p143 = scmp.lt.s32.totalorder %s16, 3
      %p144 = pnand %p142, %p143
      %p145 = pneg %p144
      // Predicated region
      $region9: #{_linear_relu_padded.1} parent=5 // pred_check
        _
      $region10: #{_linear_relu_padded.1} parent=5 // pred_check_branch
        %147 = sbr.rel (%p144) target = $region12
      $region11: #{_linear_relu_padded.1} parent=5 // pred_region
        %s148 = ssub.s32 %s16, 1
        // Predicated region
        $region13: #{_linear_relu_padded.1} parent=11 // pred_check
          %p149 = pneg %p54
        $region14: #{_linear_relu_padded.1} parent=11 // pred_check_branch
          %151 = sbr.rel (%p149) target = $region16
        $region15: #{_linear_relu_padded.1} parent=11 // pred_region
          %s153 = ssub.s32 128, 128
          %154 = vsyncadd [#allocation3], %s153
          %s155 = smul.addr %s26, 128
          %s156 = scalar_lea.hbm %s0, %s155
          %s158 = sshll.u32 [#allocation2], 4
          %s159 = int_to_ptr.vmem [resolvable:$true] %s158
          %161 = dma.hbm_to_vmem [thread:$0]  %s156, 128, %s159, [#allocation3]
        $region16: #{_linear_relu_padded.1} parent=11 // pred_fallthru
          _
      $region12: #{_linear_relu_padded.1} parent=5 // pred_fallthru
        _
      %p162 = scmp.lt.s32.totalorder %s16, 2
      // Predicated region
      $region17: #{_linear_relu_padded.1} parent=5 // pred_check
        %p163 = pneg %p162
      $region18: #{_linear_relu_padded.1} parent=5 // pred_check_branch
        %165 = sbr.rel (%p163) target = $region20
      $region19: #{_linear_relu_padded.1} parent=5 // pred_region
        // Predicated region
        $region21: #{_linear_relu_padded.1} parent=19 // pred_check
          %p166 = pneg %p74
        $region22: #{_linear_relu_padded.1} parent=19 // pred_check_branch
          %168 = sbr.rel (%p166) target = $region24
        $region23: #{_linear_relu_padded.1} parent=19 // pred_region
          %s169 = sand.u32 %s16, 1
          %s170 = scalar_lea.sflag [#allocation6], %s169
          %s171 = sand.u32 %s64, 1
          %s172 = smul.addr %s171, 256
          %s173 = scalar_lea.vmem [#allocation5], %s172
          %s174 = smul.u32 4, %s23
          %s176 = ssub.s32 4096, 4096
          %177 = vsyncadd %s170, %s176
          %s178 = smul.addr %s174, 64
          %s179 = scalar_lea.hbm %s1, %s178
          %s180 = sshll.u32 %s173, 4
          %s181 = int_to_ptr.vmem [resolvable:$true] %s180
          %186 = dma.hbm_to_vmem [thread:$0]  %s179, 4096, %s181, %s170, 512, 256, 16
        $region24: #{_linear_relu_padded.1} parent=19 // pred_fallthru
          _
        // Predicated region
        $region25: #{_linear_relu_padded.1} parent=19 // pred_check
          %p187 = pneg %p100
        $region26: #{_linear_relu_padded.1} parent=19 // pred_check_branch
          %189 = sbr.rel (%p187) target = $region28
        $region27: #{_linear_relu_padded.1} parent=19 // pred_region
          %s190 = sand.u32 %s16, 1
          %s191 = scalar_lea.sflag [#allocation6], %s190
          %s192 = sand.u32 %s90, 1
          %s193 = smul.addr %s192, 4
          %s194 = scalar_lea.vmem [#allocation7], %s193
          %s195 = smul.u32 4, %s23
          %s197 = ssub.s32 64, 64
          %198 = vsyncadd %s191, %s197
          %s199 = smul.addr %s195, 16
          %s200 = scalar_lea.hbm %s2, %s199
          %s202 = sshll.u32 %s194, 4
          %s203 = int_to_ptr.vmem [resolvable:$true] %s202
          %205 = dma.hbm_to_vmem [thread:$0]  %s200, 64, %s203, %s191
        $region28: #{_linear_relu_padded.1} parent=19 // pred_fallthru
          _
      $region20: #{_linear_relu_padded.1} parent=5 // pred_fallthru
        _
      %p206 = scmp.le.s32.totalorder 1, %s16
      %p207 = scmp.lt.s32.totalorder %s16, 3
      %p208 = pnand %p206, %p207
      %p209 = pneg %p208
      // Predicated region
      $region29: #{_linear_relu_padded.1} parent=5 // pred_check
        _
      $region30: #{_linear_relu_padded.1} parent=5 // pred_check_branch
        %211 = sbr.rel (%p208) target = $region32
      $region31: #{_linear_relu_padded.1} parent=5 // pred_region
        %s212 = ssub.s32 %s16, 1
        // Predicated region
        $region33: #{_linear_relu_padded.1} parent=31 // pred_check
          %p213 = pneg %p54
        $region34: #{_linear_relu_padded.1} parent=31 // pred_check_branch
          %215 = sbr.rel (%p213) target = $region36
        $region35: #{_linear_relu_padded.1} parent=31 // pred_region
          %216 = dma.done [#allocation3], 128
        $region36: #{_linear_relu_padded.1} parent=31 // pred_fallthru
          _
        %s217 = sand.u32 %s21, 1
        %s218 = scalar_lea.sflag [#allocation6], %s217
        %s219 = sand.u32 %s67, 1
        %s220 = smul.addr %s219, 256
        %s221 = scalar_lea.vmem [#allocation5], %s220
        // Predicated region
        $region37: #{_linear_relu_padded.1} parent=31 // pred_check
          %p222 = pneg %p80
        $region38: #{_linear_relu_padded.1} parent=31 // pred_check_branch
          %224 = sbr.rel (%p222) target = $region40
        $region39: #{_linear_relu_padded.1} parent=31 // pred_region
          %225 = dma.done %s218, 4096
        $region40: #{_linear_relu_padded.1} parent=31 // pred_fallthru
          _
        %s226 = sand.u32 %s21, 1
        %s227 = scalar_lea.sflag [#allocation6], %s226
        %s228 = sand.u32 %s93, 1
        %s229 = smul.addr %s228, 4
        %s230 = scalar_lea.vmem [#allocation7], %s229
        // Predicated region
        $region41: #{_linear_relu_padded.1} parent=31 // pred_check
          %p231 = pneg %p106
        $region42: #{_linear_relu_padded.1} parent=31 // pred_check_branch
          %233 = sbr.rel (%p231) target = $region44
        $region43: #{_linear_relu_padded.1} parent=31 // pred_region
          %234 = dma.done %s227, 64
        $region44: #{_linear_relu_padded.1} parent=31 // pred_fallthru
          _
        %p235 = pneg %p54
        %p236 = pneg %p51
        %s237 = sand.u32 %s21, 1
        %s238 = scalar_lea.sflag [#allocation6], %s237
        %s239 = sand.u32 %s67, 1
        %s240 = smul.addr %s239, 256
        %s241 = scalar_lea.vmem [#allocation5], %s240
        %p242 = pneg %p80
        %p243 = pneg %p77
        %s244 = sand.u32 %s21, 1
        %s245 = scalar_lea.sflag [#allocation6], %s244
        %s246 = sand.u32 %s93, 1
        %s247 = smul.addr %s246, 4
        %s248 = scalar_lea.vmem [#allocation7], %s247
        %p249 = pneg %p106
        %p250 = pneg %p103
        %p251 = pneg %p134
        %p252 = pneg %p131
        %s253 = sand.u32 %s121, 1
        %s254 = scalar_lea.sflag [#allocation4], %s253
        %s255 = sand.u32 %s121, 1
        %s256 = smul.addr %s255, 32
        %s257 = scalar_lea.vmem [#allocation8], %s256
        %s258 = smul.u32 4, %s25
        %s259 = smul.u32 4, %s25
        %s260 = smul.u32 4, %s25
        %v261 = vld [vmem:[%s221] sm:$0xff]
        %v262 = vld [vmem:[%s221 + $0x8] sm:$0xff]
        %v263 = vld [vmem:[%s221 + $0x10] sm:$0xff]
        %v264 = vld [vmem:[%s221 + $0x18] sm:$0xff]
        %v265 = vld [vmem:[%s221 + $0x20] sm:$0xff]
        %v266 = vld [vmem:[%s221 + $0x28] sm:$0xff]
        %v267 = vld [vmem:[%s221 + $0x30] sm:$0xff]
        %v268 = vld [vmem:[%s221 + $0x38] sm:$0xff]
        %v269 = vld [vmem:[%s221 + $0x40] sm:$0xff]
        %v270 = vld [vmem:[%s221 + $0x48] sm:$0xff]
        %v271 = vld [vmem:[%s221 + $0x50] sm:$0xff]
        %v272 = vld [vmem:[%s221 + $0x58] sm:$0xff]
        %v273 = vld [vmem:[%s221 + $0x60] sm:$0xff]
        %v274 = vld [vmem:[%s221 + $0x68] sm:$0xff]
        %v275 = vld [vmem:[%s221 + $0x70] sm:$0xff]
        %v276 = vld [vmem:[%s221 + $0x78] sm:$0xff]
        %v277 = vld [vmem:[%s221 + $0x80] sm:$0xff]
        %v278 = vld [vmem:[%s221 + $0x88] sm:$0xff]
        %v279 = vld [vmem:[%s221 + $0x90] sm:$0xff]
        %v280 = vld [vmem:[%s221 + $0x98] sm:$0xff]
        %v281 = vld [vmem:[%s221 + $0xa0] sm:$0xff]
        %v282 = vld [vmem:[%s221 + $0xa8] sm:$0xff]
        %v283 = vld [vmem:[%s221 + $0xb0] sm:$0xff]
        %v284 = vld [vmem:[%s221 + $0xb8] sm:$0xff]
        %v285 = vld [vmem:[%s221 + $0xc0] sm:$0xff]
        %v286 = vld [vmem:[%s221 + $0xc8] sm:$0xff]
        %v287 = vld [vmem:[%s221 + $0xd0] sm:$0xff]
        %v288 = vld [vmem:[%s221 + $0xd8] sm:$0xff]
        %v289 = vld [vmem:[%s221 + $0xe0] sm:$0xff]
        %v290 = vld [vmem:[%s221 + $0xe8] sm:$0xff]
        %v291 = vld [vmem:[%s221 + $0xf0] sm:$0xff]
        %v292 = vld [vmem:[%s221 + $0xf8] sm:$0xff]
        %v293 = vunpack.c.l.bf16 %v261
        %v294 = vunpack.c.h.bf16 %v261
        %v295 = vunpack.c.l.bf16 %v262
        %v296 = vunpack.c.h.bf16 %v262
        %v297 = vunpack.c.l.bf16 %v263
        %v298 = vunpack.c.h.bf16 %v263
        %v299 = vunpack.c.l.bf16 %v264
        %v300 = vunpack.c.h.bf16 %v264
        %v301 = vunpack.c.l.bf16 %v265
        %v302 = vunpack.c.h.bf16 %v265
        %v303 = vunpack.c.l.bf16 %v266
        %v304 = vunpack.c.h.bf16 %v266
        %v305 = vunpack.c.l.bf16 %v267
        %v306 = vunpack.c.h.bf16 %v267
        %v307 = vunpack.c.l.bf16 %v268
        %v308 = vunpack.c.h.bf16 %v268
        %v309 = vunpack.c.l.bf16 %v269
        %v310 = vunpack.c.h.bf16 %v269
        %v311 = vunpack.c.l.bf16 %v270
        %v312 = vunpack.c.h.bf16 %v270
        %v313 = vunpack.c.l.bf16 %v271
        %v314 = vunpack.c.h.bf16 %v271
        %v315 = vunpack.c.l.bf16 %v272
        %v316 = vunpack.c.h.bf16 %v272
        %v317 = vunpack.c.l.bf16 %v273
        %v318 = vunpack.c.h.bf16 %v273
        %v319 = vunpack.c.l.bf16 %v274
        %v320 = vunpack.c.h.bf16 %v274
        %v321 = vunpack.c.l.bf16 %v275
        %v322 = vunpack.c.h.bf16 %v275
        %v323 = vunpack.c.l.bf16 %v276
        %v324 = vunpack.c.h.bf16 %v276
        %v325 = vunpack.c.l.bf16 %v277
        %v326 = vunpack.c.h.bf16 %v277
        %v327 = vunpack.c.l.bf16 %v278
        %v328 = vunpack.c.h.bf16 %v278
        %v329 = vunpack.c.l.bf16 %v279
        %v330 = vunpack.c.h.bf16 %v279
        %v331 = vunpack.c.l.bf16 %v280
        %v332 = vunpack.c.h.bf16 %v280
        %v333 = vunpack.c.l.bf16 %v281
        %v334 = vunpack.c.h.bf16 %v281
        %v335 = vunpack.c.l.bf16 %v282
        %v336 = vunpack.c.h.bf16 %v282
        %v337 = vunpack.c.l.bf16 %v283
        %v338 = vunpack.c.h.bf16 %v283
        %v339 = vunpack.c.l.bf16 %v284
        %v340 = vunpack.c.h.bf16 %v284
        %v341 = vunpack.c.l.bf16 %v285
        %v342 = vunpack.c.h.bf16 %v285
        %v343 = vunpack.c.l.bf16 %v286
        %v344 = vunpack.c.h.bf16 %v286
        %v345 = vunpack.c.l.bf16 %v287
        %v346 = vunpack.c.h.bf16 %v287
        %v347 = vunpack.c.l.bf16 %v288
        %v348 = vunpack.c.h.bf16 %v288
        %v349 = vunpack.c.l.bf16 %v289
        %v350 = vunpack.c.h.bf16 %v289
        %v351 = vunpack.c.l.bf16 %v290
        %v352 = vunpack.c.h.bf16 %v290
        %v353 = vunpack.c.l.bf16 %v291
        %v354 = vunpack.c.h.bf16 %v291
        %v355 = vunpack.c.l.bf16 %v292
        %v356 = vunpack.c.h.bf16 %v292
        %v357 = vld [vmem:[#allocation2] sm:$0xff]
        %v358 = vld [vmem:[%s230] sm:$0xf]
        %v360 = vlaneseq
        %v361 = vshrl.u32 %v360, 7
        %v362 = vsub.s32 0, %v361
        %v363 = vrot.slane %v358, %v362
        %v364 = vlaneseq
        %v365 = vshrl.u32 %v364, 7
        %v366 = vsub.s32 1, %v365
        %v367 = vrot.slane %v358, %v366
        %v368 = vlaneseq
        %v369 = vshrl.u32 %v368, 7
        %v370 = vsub.s32 2, %v369
        %v371 = vrot.slane %v358, %v370
        %v372 = vlaneseq
        %v373 = vshrl.u32 %v372, 7
        %v374 = vsub.s32 3, %v373
        %v375 = vrot.slane %v358, %v374
        %380 = vmatprep.subr.mxu0 %v354
        %381 = vmatpush1.msra.mxu0 %v353
        %382 = vmatprep.subr.mxu0 %v350
        %383 = vmatpush1.msra.mxu0 %v349
        %384 = vmatprep.subr.mxu0 %v346
        %385 = vmatpush1.msra.mxu0 %v345
        %386 = vmatprep.subr.mxu0 %v342
        %387 = vmatpush1.msra.mxu0 %v341
        %388 = vmatprep.subr.mxu0 %v338
        %389 = vmatpush1.msra.mxu0 %v337
        %390 = vmatprep.subr.mxu0 %v334
        %391 = vmatpush1.msra.mxu0 %v333
        %392 = vmatprep.subr.mxu0 %v330
        %393 = vmatpush1.msra.mxu0 %v329
        %394 = vmatprep.subr.mxu0 %v326
        %395 = vmatpush1.msra.mxu0 %v325
        %396 = vmatprep.subr.mxu0 %v322
        %397 = vmatpush1.msra.mxu0 %v321
        %398 = vmatprep.subr.mxu0 %v318
        %399 = vmatpush1.msra.mxu0 %v317
        %400 = vmatprep.subr.mxu0 %v314
        %401 = vmatpush1.msra.mxu0 %v313
        %402 = vmatprep.subr.mxu0 %v310
        %403 = vmatpush1.msra.mxu0 %v309
        %404 = vmatprep.subr.mxu0 %v306
        %405 = vmatpush1.msra.mxu0 %v305
        %406 = vmatprep.subr.mxu0 %v302
        %407 = vmatpush1.msra.mxu0 %v301
        %408 = vmatprep.subr.mxu0 %v298
        %409 = vmatpush1.msra.mxu0 %v297
        %410 = vmatprep.subr.mxu0 %v294
        %411 = vmatpush1.msra.mxu0 %v293
        %412 = vmatprep.subr.mxu0 0.0
        %413 = vmatpush2.msra.mxu0 0.0
        %414 = vmatprep.subr.mxu0 0.0
        %415 = vmatpush2.msra.mxu0 0.0
        %416 = vmatprep.subr.mxu0 0.0
        %417 = vmatpush2.msra.mxu0 0.0
        %418 = vmatprep.subr.mxu0 0.0
        %419 = vmatpush2.msra.mxu0 0.0
        %420 = vmatprep.subr.mxu0 0.0
        %421 = vmatpush2.msra.mxu0 0.0
        %422 = vmatprep.subr.mxu0 0.0
        %423 = vmatpush2.msra.mxu0 0.0
        %424 = vmatprep.subr.mxu0 0.0
        %425 = vmatpush2.msra.mxu0 0.0
        %426 = vmatprep.subr.mxu0 0.0
        %427 = vmatpush2.msra.mxu0 0.0
        %428 = vmatprep.subr.mxu0 0.0
        %429 = vmatpush2.msra.mxu0 0.0
        %430 = vmatprep.subr.mxu0 0.0
        %431 = vmatpush2.msra.mxu0 0.0
        %432 = vmatprep.subr.mxu0 0.0
        %433 = vmatpush2.msra.mxu0 0.0
        %434 = vmatprep.subr.mxu0 0.0
        %435 = vmatpush2.msra.mxu0 0.0
        %436 = vmatprep.subr.mxu0 0.0
        %437 = vmatpush2.msra.mxu0 0.0
        %438 = vmatprep.subr.mxu0 0.0
        %439 = vmatpush2.msra.mxu0 0.0
        %440 = vmatprep.subr.mxu0 0.0
        %441 = vmatpush2.msra.mxu0 0.0
        %442 = vmatprep.subr.mxu0 0.0
        %443 = vmatpush2.msra.mxu0 0.0
        %444 = vmatprep.mubr.f32.mxu0 0.0
        %v445 = vand.u32 %v357, 4294901760
        %v446 = vsub.f32 %v357, %v445
        %v447 = vand.u32 %v446, 4294901760
        %v448 = vsub.f32 %v446, %v447
        %v449 = vand.u32 %v448, 4294901760
        %450 = vmatmul.mubr.f32.gmra.mxu0 %v449
        %v451 = vpop.f32.mrf.mxu0
        %v452 = vadd.f32 %v363, %v451
        %v453 = vpop.f32.mrf.mxu0
        %v454 = vadd.f32 %v367, %v453
        %455 = vdwg.mxu0
        %v456 = vsub.f32 %v354, %v354
        %v457 = vand.u32 %v456, 4294901760
        %v458 = vsub.f32 %v456, %v457
        %v459 = vand.u32 %v458, 4294901760
        %460 = vmatprep.subr.mxu0 %v459
        %v461 = vsub.f32 %v353, %v353
        %v462 = vand.u32 %v461, 4294901760
        %v463 = vsub.f32 %v461, %v462
        %v464 = vand.u32 %v463, 4294901760
        %465 = vmatpush1.msra.mxu0 %v464
        %v466 = vsub.f32 %v350, %v350
        %v467 = vand.u32 %v466, 4294901760
        %v468 = vsub.f32 %v466, %v467
        %v469 = vand.u32 %v468, 4294901760
        %470 = vmatprep.subr.mxu0 %v469
        %v471 = vsub.f32 %v349, %v349
        %v472 = vand.u32 %v471, 4294901760
        %v473 = vsub.f32 %v471, %v472
        %v474 = vand.u32 %v473, 4294901760
        %475 = vmatpush1.msra.mxu0 %v474
        %v476 = vsub.f32 %v346, %v346
        %v477 = vand.u32 %v476, 4294901760
        %v478 = vsub.f32 %v476, %v477
        %v479 = vand.u32 %v478, 4294901760
        %480 = vmatprep.subr.mxu0 %v479
        %v481 = vsub.f32 %v345, %v345
        %v482 = vand.u32 %v481, 4294901760
        %v483 = vsub.f32 %v481, %v482
        %v484 = vand.u32 %v483, 4294901760
        %485 = vmatpush1.msra.mxu0 %v484
        %v486 = vsub.f32 %v342, %v342
        %v487 = vand.u32 %v486, 4294901760
        %v488 = vsub.f32 %v486, %v487
        %v489 = vand.u32 %v488, 4294901760
        %490 = vmatprep.subr.mxu0 %v489
        %v491 = vsub.f32 %v341, %v341
        %v492 = vand.u32 %v491, 4294901760
        %v493 = vsub.f32 %v491, %v492
        %v494 = vand.u32 %v493, 4294901760
        %495 = vmatpush1.msra.mxu0 %v494
        %v496 = vsub.f32 %v338, %v338
        %v497 = vand.u32 %v496, 4294901760
        %v498 = vsub.f32 %v496, %v497
        %v499 = vand.u32 %v498, 4294901760
        %500 = vmatprep.subr.mxu0 %v499
        %v501 = vsub.f32 %v337, %v337
        %v502 = vand.u32 %v501, 4294901760
        %v503 = vsub.f32 %v501, %v502
        %v504 = vand.u32 %v503, 4294901760
        %505 = vmatpush1.msra.mxu0 %v504
        %v506 = vsub.f32 %v334, %v334
        %v507 = vand.u32 %v506, 4294901760
        %v508 = vsub.f32 %v506, %v507
        %v509 = vand.u32 %v508, 4294901760
        %510 = vmatprep.subr.mxu0 %v509
        %v511 = vsub.f32 %v333, %v333
        %v512 = vand.u32 %v511, 4294901760
        %v513 = vsub.f32 %v511, %v512
        %v514 = vand.u32 %v513, 4294901760
        %515 = vmatpush1.msra.mxu0 %v514
        %v516 = vsub.f32 %v330, %v330
        %v517 = vand.u32 %v516, 4294901760
        %v518 = vsub.f32 %v516, %v517
        %v519 = vand.u32 %v518, 4294901760
        %520 = vmatprep.subr.mxu0 %v519
        %v521 = vsub.f32 %v329, %v329
        %v522 = vand.u32 %v521, 4294901760
        %v523 = vsub.f32 %v521, %v522
        %v524 = vand.u32 %v523, 4294901760
        %525 = vmatpush1.msra.mxu0 %v524
        %v526 = vsub.f32 %v326, %v326
        %v527 = vand.u32 %v526, 4294901760
        %v528 = vsub.f32 %v526, %v527
        %v529 = vand.u32 %v528, 4294901760
        %530 = vmatprep.subr.mxu0 %v529
        %v531 = vsub.f32 %v325, %v325
        %v532 = vand.u32 %v531, 4294901760
        %v533 = vsub.f32 %v531, %v532
        %v534 = vand.u32 %v533, 4294901760
        %535 = vmatpush1.msra.mxu0 %v534
        %v536 = vsub.f32 %v322, %v322
        %v537 = vand.u32 %v536, 4294901760
        %v538 = vsub.f32 %v536, %v537
        %v539 = vand.u32 %v538, 4294901760
        %540 = vmatprep.subr.mxu0 %v539
        %v541 = vsub.f32 %v321, %v321
        %v542 = vand.u32 %v541, 4294901760
        %v543 = vsub.f32 %v541, %v542
        %v544 = vand.u32 %v543, 4294901760
        %545 = vmatpush1.msra.mxu0 %v544
        %v546 = vsub.f32 %v318, %v318
        %v547 = vand.u32 %v546, 4294901760
        %v548 = vsub.f32 %v546, %v547
        %v549 = vand.u32 %v548, 4294901760
        %550 = vmatprep.subr.mxu0 %v549
        %v551 = vsub.f32 %v317, %v317
        %v552 = vand.u32 %v551, 4294901760
        %v553 = vsub.f32 %v551, %v552
        %v554 = vand.u32 %v553, 4294901760
        %555 = vmatpush1.msra.mxu0 %v554
        %v556 = vsub.f32 %v314, %v314
        %v557 = vand.u32 %v556, 4294901760
        %v558 = vsub.f32 %v556, %v557
        %v559 = vand.u32 %v558, 4294901760
        %560 = vmatprep.subr.mxu0 %v559
        %v561 = vsub.f32 %v313, %v313
        %v562 = vand.u32 %v561, 4294901760
        %v563 = vsub.f32 %v561, %v562
        %v564 = vand.u32 %v563, 4294901760
        %565 = vmatpush1.msra.mxu0 %v564
        %v566 = vsub.f32 %v310, %v310
        %v567 = vand.u32 %v566, 4294901760
        %v568 = vsub.f32 %v566, %v567
        %v569 = vand.u32 %v568, 4294901760
        %570 = vmatprep.subr.mxu0 %v569
        %v571 = vsub.f32 %v309, %v309
        %v572 = vand.u32 %v571, 4294901760
        %v573 = vsub.f32 %v571, %v572
        %v574 = vand.u32 %v573, 4294901760
        %575 = vmatpush1.msra.mxu0 %v574
        %v576 = vsub.f32 %v306, %v306
        %v577 = vand.u32 %v576, 4294901760
        %v578 = vsub.f32 %v576, %v577
        %v579 = vand.u32 %v578, 4294901760
        %580 = vmatprep.subr.mxu0 %v579
        %v581 = vsub.f32 %v305, %v305
        %v582 = vand.u32 %v581, 4294901760
        %v583 = vsub.f32 %v581, %v582
        %v584 = vand.u32 %v583, 4294901760
        %585 = vmatpush1.msra.mxu0 %v584
        %v586 = vsub.f32 %v302, %v302
        %v587 = vand.u32 %v586, 4294901760
        %v588 = vsub.f32 %v586, %v587
        %v589 = vand.u32 %v588, 4294901760
        %590 = vmatprep.subr.mxu0 %v589
        %v591 = vsub.f32 %v301, %v301
        %v592 = vand.u32 %v591, 4294901760
        %v593 = vsub.f32 %v591, %v592
        %v594 = vand.u32 %v593, 4294901760
        %595 = vmatpush1.msra.mxu0 %v594
        %v596 = vsub.f32 %v298, %v298
        %v597 = vand.u32 %v596, 4294901760
        %v598 = vsub.f32 %v596, %v597
        %v599 = vand.u32 %v598, 4294901760
        %600 = vmatprep.subr.mxu0 %v599
        %v601 = vsub.f32 %v297, %v297
        %v602 = vand.u32 %v601, 4294901760
        %v603 = vsub.f32 %v601, %v602
        %v604 = vand.u32 %v603, 4294901760
        %605 = vmatpush1.msra.mxu0 %v604
        %v606 = vsub.f32 %v294, %v294
        %v607 = vand.u32 %v606, 4294901760
        %v608 = vsub.f32 %v606, %v607
        %v609 = vand.u32 %v608, 4294901760
        %610 = vmatprep.subr.mxu0 %v609
        %v611 = vsub.f32 %v293, %v293
        %v612 = vand.u32 %v611, 4294901760
        %v613 = vsub.f32 %v611, %v612
        %v614 = vand.u32 %v613, 4294901760
        %615 = vmatpush1.msra.mxu0 %v614
        %616 = vmatprep.subr.mxu0 0.0
        %617 = vmatpush2.msra.mxu0 0.0
        %618 = vmatprep.subr.mxu0 0.0
        %619 = vmatpush2.msra.mxu0 0.0
        %620 = vmatprep.subr.mxu0 0.0
        %621 = vmatpush2.msra.mxu0 0.0
        %622 = vmatprep.subr.mxu0 0.0
        %623 = vmatpush2.msra.mxu0 0.0
        %624 = vmatprep.subr.mxu0 0.0
        %625 = vmatpush2.msra.mxu0 0.0
        %626 = vmatprep.subr.mxu0 0.0
        %627 = vmatpush2.msra.mxu0 0.0
        %628 = vmatprep.subr.mxu0 0.0
        %629 = vmatpush2.msra.mxu0 0.0
        %630 = vmatprep.subr.mxu0 0.0
        %631 = vmatpush2.msra.mxu0 0.0
        %632 = vmatprep.subr.mxu0 0.0
        %633 = vmatpush2.msra.mxu0 0.0
        %634 = vmatprep.subr.mxu0 0.0
        %635 = vmatpush2.msra.mxu0 0.0
        %636 = vmatprep.subr.mxu0 0.0
        %637 = vmatpush2.msra.mxu0 0.0
        %638 = vmatprep.subr.mxu0 0.0
        %639 = vmatpush2.msra.mxu0 0.0
        %640 = vmatprep.subr.mxu0 0.0
        %641 = vmatpush2.msra.mxu0 0.0
        %642 = vmatprep.subr.mxu0 0.0
        %643 = vmatpush2.msra.mxu0 0.0
        %644 = vmatprep.subr.mxu0 0.0
        %645 = vmatpush2.msra.mxu0 0.0
        %646 = vmatprep.subr.mxu0 0.0
        %647 = vmatpush2.msra.mxu0 0.0
        %648 = vmatprep.mubr.f32.mxu0 0.0
        %v649 = vand.u32 %v357, 4294901760
        %650 = vmatmul.mubr.f32.gmra.mxu0 %v649
        %v651 = vpop.f32.mrf.mxu0
        %v652 = vadd.f32 %v452, %v651
        %v653 = vpop.f32.mrf.mxu0
        %v654 = vadd.f32 %v454, %v653
        %655 = vdwg.mxu0
        %v656 = vsub.f32 %v354, %v354
        %657 = vmatprep.subr.mxu0 %v656
        %v658 = vsub.f32 %v353, %v353
        %659 = vmatpush1.msra.mxu0 %v658
        %v660 = vsub.f32 %v350, %v350
        %661 = vmatprep.subr.mxu0 %v660
        %v662 = vsub.f32 %v349, %v349
        %663 = vmatpush1.msra.mxu0 %v662
        %v664 = vsub.f32 %v346, %v346
        %665 = vmatprep.subr.mxu0 %v664
        %v666 = vsub.f32 %v345, %v345
        %667 = vmatpush1.msra.mxu0 %v666
        %v668 = vsub.f32 %v342, %v342
        %669 = vmatprep.subr.mxu0 %v668
        %v670 = vsub.f32 %v341, %v341
        %671 = vmatpush1.msra.mxu0 %v670
        %v672 = vsub.f32 %v338, %v338
        %673 = vmatprep.subr.mxu0 %v672
        %v674 = vsub.f32 %v337, %v337
        %675 = vmatpush1.msra.mxu0 %v674
        %v676 = vsub.f32 %v334, %v334
        %677 = vmatprep.subr.mxu0 %v676
        %v678 = vsub.f32 %v333, %v333
        %679 = vmatpush1.msra.mxu0 %v678
        %v680 = vsub.f32 %v330, %v330
        %681 = vmatprep.subr.mxu0 %v680
        %v682 = vsub.f32 %v329, %v329
        %683 = vmatpush1.msra.mxu0 %v682
        %v684 = vsub.f32 %v326, %v326
        %685 = vmatprep.subr.mxu0 %v684
        %v686 = vsub.f32 %v325, %v325
        %687 = vmatpush1.msra.mxu0 %v686
        %v688 = vsub.f32 %v322, %v322
        %689 = vmatprep.subr.mxu0 %v688
        %v690 = vsub.f32 %v321, %v321
        %691 = vmatpush1.msra.mxu0 %v690
        %v692 = vsub.f32 %v318, %v318
        %693 = vmatprep.subr.mxu0 %v692
        %v694 = vsub.f32 %v317, %v317
        %695 = vmatpush1.msra.mxu0 %v694
        %v696 = vsub.f32 %v314, %v314
        %697 = vmatprep.subr.mxu0 %v696
        %v698 = vsub.f32 %v313, %v313
        %699 = vmatpush1.msra.mxu0 %v698
        %v700 = vsub.f32 %v310, %v310
        %701 = vmatprep.subr.mxu0 %v700
        %v702 = vsub.f32 %v309, %v309
        %703 = vmatpush1.msra.mxu0 %v702
        %v704 = vsub.f32 %v306, %v306
        %705 = vmatprep.subr.mxu0 %v704
        %v706 = vsub.f32 %v305, %v305
        %707 = vmatpush1.msra.mxu0 %v706
        %v708 = vsub.f32 %v302, %v302
        %709 = vmatprep.subr.mxu0 %v708
        %v710 = vsub.f32 %v301, %v301
        %711 = vmatpush1.msra.mxu0 %v710
        %v712 = vsub.f32 %v298, %v298
        %713 = vmatprep.subr.mxu0 %v712
        %v714 = vsub.f32 %v297, %v297
        %715 = vmatpush1.msra.mxu0 %v714
        %v716 = vsub.f32 %v294, %v294
        %717 = vmatprep.subr.mxu0 %v716
        %v718 = vsub.f32 %v293, %v293
        %719 = vmatpush1.msra.mxu0 %v718
        %720 = vmatprep.subr.mxu0 0.0
        %721 = vmatpush2.msra.mxu0 0.0
        %722 = vmatprep.subr.mxu0 0.0
        %723 = vmatpush2.msra.mxu0 0.0
        %724 = vmatprep.subr.mxu0 0.0
        %725 = vmatpush2.msra.mxu0 0.0
        %726 = vmatprep.subr.mxu0 0.0
        %727 = vmatpush2.msra.mxu0 0.0
        %728 = vmatprep.subr.mxu0 0.0
        %729 = vmatpush2.msra.mxu0 0.0
        %730 = vmatprep.subr.mxu0 0.0
        %731 = vmatpush2.msra.mxu0 0.0
        %732 = vmatprep.subr.mxu0 0.0
        %733 = vmatpush2.msra.mxu0 0.0
        %734 = vmatprep.subr.mxu0 0.0
        %735 = vmatpush2.msra.mxu0 0.0
        %736 = vmatprep.subr.mxu0 0.0
        %737 = vmatpush2.msra.mxu0 0.0
        %738 = vmatprep.subr.mxu0 0.0
        %739 = vmatpush2.msra.mxu0 0.0
        %740 = vmatprep.subr.mxu0 0.0
        %741 = vmatpush2.msra.mxu0 0.0
        %742 = vmatprep.subr.mxu0 0.0
        %743 = vmatpush2.msra.mxu0 0.0
        %744 = vmatprep.subr.mxu0 0.0
        %745 = vmatpush2.msra.mxu0 0.0
        %746 = vmatprep.subr.mxu0 0.0
        %747 = vmatpush2.msra.mxu0 0.0
        %748 = vmatprep.subr.mxu0 0.0
        %749 = vmatpush2.msra.mxu0 0.0
        %750 = vmatprep.subr.mxu0 0.0
        %751 = vmatpush2.msra.mxu0 0.0
        %752 = vmatprep.mubr.f32.mxu0 0.0
        %v753 = vand.u32 %v357, 4294901760
        %v754 = vsub.f32 %v357, %v753
        %755 = vmatmul.mubr.f32.gmra.mxu0 %v754
        %v756 = vpop.f32.mrf.mxu0
        %v757 = vadd.f32 %v652, %v756
        %v758 = vpop.f32.mrf.mxu0
        %v759 = vadd.f32 %v654, %v758
        %760 = vdwg.mxu0
        %761 = vmatprep.subr.mxu0 %v354
        %762 = vmatpush1.msra.mxu0 %v353
        %763 = vmatprep.subr.mxu0 %v350
        %764 = vmatpush1.msra.mxu0 %v349
        %765 = vmatprep.subr.mxu0 %v346
        %766 = vmatpush1.msra.mxu0 %v345
        %767 = vmatprep.subr.mxu0 %v342
        %768 = vmatpush1.msra.mxu0 %v341
        %769 = vmatprep.subr.mxu0 %v338
        %770 = vmatpush1.msra.mxu0 %v337
        %771 = vmatprep.subr.mxu0 %v334
        %772 = vmatpush1.msra.mxu0 %v333
        %773 = vmatprep.subr.mxu0 %v330
        %774 = vmatpush1.msra.mxu0 %v329
        %775 = vmatprep.subr.mxu0 %v326
        %776 = vmatpush1.msra.mxu0 %v325
        %777 = vmatprep.subr.mxu0 %v322
        %778 = vmatpush1.msra.mxu0 %v321
        %779 = vmatprep.subr.mxu0 %v318
        %780 = vmatpush1.msra.mxu0 %v317
        %781 = vmatprep.subr.mxu0 %v314
        %782 = vmatpush1.msra.mxu0 %v313
        %783 = vmatprep.subr.mxu0 %v310
        %784 = vmatpush1.msra.mxu0 %v309
        %785 = vmatprep.subr.mxu0 %v306
        %786 = vmatpush1.msra.mxu0 %v305
        %787 = vmatprep.subr.mxu0 %v302
        %788 = vmatpush1.msra.mxu0 %v301
        %789 = vmatprep.subr.mxu0 %v298
        %790 = vmatpush1.msra.mxu0 %v297
        %791 = vmatprep.subr.mxu0 %v294
        %792 = vmatpush1.msra.mxu0 %v293
        %793 = vmatprep.subr.mxu0 0.0
        %794 = vmatpush2.msra.mxu0 0.0
        %795 = vmatprep.subr.mxu0 0.0
        %796 = vmatpush2.msra.mxu0 0.0
        %797 = vmatprep.subr.mxu0 0.0
        %798 = vmatpush2.msra.mxu0 0.0
        %799 = vmatprep.subr.mxu0 0.0
        %800 = vmatpush2.msra.mxu0 0.0
        %801 = vmatprep.subr.mxu0 0.0
        %802 = vmatpush2.msra.mxu0 0.0
        %803 = vmatprep.subr.mxu0 0.0
        %804 = vmatpush2.msra.mxu0 0.0
        %805 = vmatprep.subr.mxu0 0.0
        %806 = vmatpush2.msra.mxu0 0.0
        %807 = vmatprep.subr.mxu0 0.0
        %808 = vmatpush2.msra.mxu0 0.0
        %809 = vmatprep.subr.mxu0 0.0
        %810 = vmatpush2.msra.mxu0 0.0
        %811 = vmatprep.subr.mxu0 0.0
        %812 = vmatpush2.msra.mxu0 0.0
        %813 = vmatprep.subr.mxu0 0.0
        %814 = vmatpush2.msra.mxu0 0.0
        %815 = vmatprep.subr.mxu0 0.0
        %816 = vmatpush2.msra.mxu0 0.0
        %817 = vmatprep.subr.mxu0 0.0
        %818 = vmatpush2.msra.mxu0 0.0
        %819 = vmatprep.subr.mxu0 0.0
        %820 = vmatpush2.msra.mxu0 0.0
        %821 = vmatprep.subr.mxu0 0.0
        %822 = vmatpush2.msra.mxu0 0.0
        %823 = vmatprep.subr.mxu0 0.0
        %824 = vmatpush2.msra.mxu0 0.0
        %825 = vmatprep.mubr.f32.mxu0 0.0
        %v826 = vand.u32 %v357, 4294901760
        %v827 = vsub.f32 %v357, %v826
        %v828 = vand.u32 %v827, 4294901760
        %829 = vmatmul.mubr.f32.gmra.mxu0 %v828
        %v830 = vpop.f32.mrf.mxu0
        %v831 = vadd.f32 %v757, %v830
        %v832 = vpop.f32.mrf.mxu0
        %v833 = vadd.f32 %v759, %v832
        %834 = vdwg.mxu0
        %v835 = vsub.f32 %v354, %v354
        %v836 = vand.u32 %v835, 4294901760
        %837 = vmatprep.subr.mxu0 %v836
        %v838 = vsub.f32 %v353, %v353
        %v839 = vand.u32 %v838, 4294901760
        %840 = vmatpush1.msra.mxu0 %v839
        %v841 = vsub.f32 %v350, %v350
        %v842 = vand.u32 %v841, 4294901760
        %843 = vmatprep.subr.mxu0 %v842
        %v844 = vsub.f32 %v349, %v349
        %v845 = vand.u32 %v844, 4294901760
        %846 = vmatpush1.msra.mxu0 %v845
        %v847 = vsub.f32 %v346, %v346
        %v848 = vand.u32 %v847, 4294901760
        %849 = vmatprep.subr.mxu0 %v848
        %v850 = vsub.f32 %v345, %v345
        %v851 = vand.u32 %v850, 4294901760
        %852 = vmatpush1.msra.mxu0 %v851
        %v853 = vsub.f32 %v342, %v342
        %v854 = vand.u32 %v853, 4294901760
        %855 = vmatprep.subr.mxu0 %v854
        %v856 = vsub.f32 %v341, %v341
        %v857 = vand.u32 %v856, 4294901760
        %858 = vmatpush1.msra.mxu0 %v857
        %v859 = vsub.f32 %v338, %v338
        %v860 = vand.u32 %v859, 4294901760
        %861 = vmatprep.subr.mxu0 %v860
        %v862 = vsub.f32 %v337, %v337
        %v863 = vand.u32 %v862, 4294901760
        %864 = vmatpush1.msra.mxu0 %v863
        %v865 = vsub.f32 %v334, %v334
        %v866 = vand.u32 %v865, 4294901760
        %867 = vmatprep.subr.mxu0 %v866
        %v868 = vsub.f32 %v333, %v333
        %v869 = vand.u32 %v868, 4294901760
        %870 = vmatpush1.msra.mxu0 %v869
        %v871 = vsub.f32 %v330, %v330
        %v872 = vand.u32 %v871, 4294901760
        %873 = vmatprep.subr.mxu0 %v872
        %v874 = vsub.f32 %v329, %v329
        %v875 = vand.u32 %v874, 4294901760
        %876 = vmatpush1.msra.mxu0 %v875
        %v877 = vsub.f32 %v326, %v326
        %v878 = vand.u32 %v877, 4294901760
        %879 = vmatprep.subr.mxu0 %v878
        %v880 = vsub.f32 %v325, %v325
        %v881 = vand.u32 %v880, 4294901760
        %882 = vmatpush1.msra.mxu0 %v881
        %v883 = vsub.f32 %v322, %v322
        %v884 = vand.u32 %v883, 4294901760
        %885 = vmatprep.subr.mxu0 %v884
        %v886 = vsub.f32 %v321, %v321
        %v887 = vand.u32 %v886, 4294901760
        %888 = vmatpush1.msra.mxu0 %v887
        %v889 = vsub.f32 %v318, %v318
        %v890 = vand.u32 %v889, 4294901760
        %891 = vmatprep.subr.mxu0 %v890
        %v892 = vsub.f32 %v317, %v317
        %v893 = vand.u32 %v892, 4294901760
        %894 = vmatpush1.msra.mxu0 %v893
        %v895 = vsub.f32 %v314, %v314
        %v896 = vand.u32 %v895, 4294901760
        %897 = vmatprep.subr.mxu0 %v896
        %v898 = vsub.f32 %v313, %v313
        %v899 = vand.u32 %v898, 4294901760
        %900 = vmatpush1.msra.mxu0 %v899
        %v901 = vsub.f32 %v310, %v310
        %v902 = vand.u32 %v901, 4294901760
        %903 = vmatprep.subr.mxu0 %v902
        %v904 = vsub.f32 %v309, %v309
        %v905 = vand.u32 %v904, 4294901760
        %906 = vmatpush1.msra.mxu0 %v905
        %v907 = vsub.f32 %v306, %v306
        %v908 = vand.u32 %v907, 4294901760
        %909 = vmatprep.subr.mxu0 %v908
        %v910 = vsub.f32 %v305, %v305
        %v911 = vand.u32 %v910, 4294901760
        %912 = vmatpush1.msra.mxu0 %v911
        %v913 = vsub.f32 %v302, %v302
        %v914 = vand.u32 %v913, 4294901760
        %915 = vmatprep.subr.mxu0 %v914
        %v916 = vsub.f32 %v301, %v301
        %v917 = vand.u32 %v916, 4294901760
        %918 = vmatpush1.msra.mxu0 %v917
        %v919 = vsub.f32 %v298, %v298
        %v920 = vand.u32 %v919, 4294901760
        %921 = vmatprep.subr.mxu0 %v920
        %v922 = vsub.f32 %v297, %v297
        %v923 = vand.u32 %v922, 4294901760
        %924 = vmatpush1.msra.mxu0 %v923
        %v925 = vsub.f32 %v294, %v294
        %v926 = vand.u32 %v925, 4294901760
        %927 = vmatprep.subr.mxu0 %v926
        %v928 = vsub.f32 %v293, %v293
        %v929 = vand.u32 %v928, 4294901760
        %930 = vmatpush1.msra.mxu0 %v929
        %931 = vmatprep.subr.mxu0 0.0
        %932 = vmatpush2.msra.mxu0 0.0
        %933 = vmatprep.subr.mxu0 0.0
        %934 = vmatpush2.msra.mxu0 0.0
        %935 = vmatprep.subr.mxu0 0.0
        %936 = vmatpush2.msra.mxu0 0.0
        %937 = vmatprep.subr.mxu0 0.0
        %938 = vmatpush2.msra.mxu0 0.0
        %939 = vmatprep.subr.mxu0 0.0
        %940 = vmatpush2.msra.mxu0 0.0
        %941 = vmatprep.subr.mxu0 0.0
        %942 = vmatpush2.msra.mxu0 0.0
        %943 = vmatprep.subr.mxu0 0.0
        %944 = vmatpush2.msra.mxu0 0.0
        %945 = vmatprep.subr.mxu0 0.0
        %946 = vmatpush2.msra.mxu0 0.0
        %947 = vmatprep.subr.mxu0 0.0
        %948 = vmatpush2.msra.mxu0 0.0
        %949 = vmatprep.subr.mxu0 0.0
        %950 = vmatpush2.msra.mxu0 0.0
        %951 = vmatprep.subr.mxu0 0.0
        %952 = vmatpush2.msra.mxu0 0.0
        %953 = vmatprep.subr.mxu0 0.0
        %954 = vmatpush2.msra.mxu0 0.0
        %955 = vmatprep.subr.mxu0 0.0
        %956 = vmatpush2.msra.mxu0 0.0
        %957 = vmatprep.subr.mxu0 0.0
        %958 = vmatpush2.msra.mxu0 0.0
        %959 = vmatprep.subr.mxu0 0.0
        %960 = vmatpush2.msra.mxu0 0.0
        %961 = vmatprep.subr.mxu0 0.0
        %962 = vmatpush2.msra.mxu0 0.0
        %963 = vmatprep.mubr.f32.mxu0 0.0
        %v964 = vand.u32 %v357, 4294901760
        %965 = vmatmul.mubr.f32.gmra.mxu0 %v964
        %v966 = vpop.f32.mrf.mxu0
        %v967 = vadd.f32 %v831, %v966
        %v968 = vpop.f32.mrf.mxu0
        %v969 = vadd.f32 %v833, %v968
        %970 = vdwg.mxu0
        %971 = vmatprep.subr.mxu0 %v354
        %972 = vmatpush1.msra.mxu0 %v353
        %973 = vmatprep.subr.mxu0 %v350
        %974 = vmatpush1.msra.mxu0 %v349
        %975 = vmatprep.subr.mxu0 %v346
        %976 = vmatpush1.msra.mxu0 %v345
        %977 = vmatprep.subr.mxu0 %v342
        %978 = vmatpush1.msra.mxu0 %v341
        %979 = vmatprep.subr.mxu0 %v338
        %980 = vmatpush1.msra.mxu0 %v337
        %981 = vmatprep.subr.mxu0 %v334
        %982 = vmatpush1.msra.mxu0 %v333
        %983 = vmatprep.subr.mxu0 %v330
        %984 = vmatpush1.msra.mxu0 %v329
        %985 = vmatprep.subr.mxu0 %v326
        %986 = vmatpush1.msra.mxu0 %v325
        %987 = vmatprep.subr.mxu0 %v322
        %988 = vmatpush1.msra.mxu0 %v321
        %989 = vmatprep.subr.mxu0 %v318
        %990 = vmatpush1.msra.mxu0 %v317
        %991 = vmatprep.subr.mxu0 %v314
        %992 = vmatpush1.msra.mxu0 %v313
        %993 = vmatprep.subr.mxu0 %v310
        %994 = vmatpush1.msra.mxu0 %v309
        %995 = vmatprep.subr.mxu0 %v306
        %996 = vmatpush1.msra.mxu0 %v305
        %997 = vmatprep.subr.mxu0 %v302
        %998 = vmatpush1.msra.mxu0 %v301
        %999 = vmatprep.subr.mxu0 %v298
        %1000 = vmatpush1.msra.mxu0 %v297
        %1001 = vmatprep.subr.mxu0 %v294
        %1002 = vmatpush1.msra.mxu0 %v293
        %1003 = vmatprep.subr.mxu0 0.0
        %1004 = vmatpush2.msra.mxu0 0.0
        %1005 = vmatprep.subr.mxu0 0.0
        %1006 = vmatpush2.msra.mxu0 0.0
        %1007 = vmatprep.subr.mxu0 0.0
        %1008 = vmatpush2.msra.mxu0 0.0
        %1009 = vmatprep.subr.mxu0 0.0
        %1010 = vmatpush2.msra.mxu0 0.0
        %1011 = vmatprep.subr.mxu0 0.0
        %1012 = vmatpush2.msra.mxu0 0.0
        %1013 = vmatprep.subr.mxu0 0.0
        %1014 = vmatpush2.msra.mxu0 0.0
        %1015 = vmatprep.subr.mxu0 0.0
        %1016 = vmatpush2.msra.mxu0 0.0
        %1017 = vmatprep.subr.mxu0 0.0
        %1018 = vmatpush2.msra.mxu0 0.0
        %1019 = vmatprep.subr.mxu0 0.0
        %1020 = vmatpush2.msra.mxu0 0.0
        %1021 = vmatprep.subr.mxu0 0.0
        %1022 = vmatpush2.msra.mxu0 0.0
        %1023 = vmatprep.subr.mxu0 0.0
        %1024 = vmatpush2.msra.mxu0 0.0
        %1025 = vmatprep.subr.mxu0 0.0
        %1026 = vmatpush2.msra.mxu0 0.0
        %1027 = vmatprep.subr.mxu0 0.0
        %1028 = vmatpush2.msra.mxu0 0.0
        %1029 = vmatprep.subr.mxu0 0.0
        %1030 = vmatpush2.msra.mxu0 0.0
        %1031 = vmatprep.subr.mxu0 0.0
        %1032 = vmatpush2.msra.mxu0 0.0
        %1033 = vmatprep.subr.mxu0 0.0
        %1034 = vmatpush2.msra.mxu0 0.0
        %1035 = vmatprep.mubr.f32.mxu0 0.0
        %v1036 = vand.u32 %v357, 4294901760
        %1037 = vmatmul.mubr.f32.gmra.mxu0 %v1036
        %v1038 = vpop.f32.mrf.mxu0
        %v1039 = vadd.f32 %v967, %v1038
        %v1040 = vpop.f32.mrf.mxu0
        %v1041 = vadd.f32 %v969, %v1040
        %1042 = vdwg.mxu0
        %1043 = vmatprep.subr.mxu0 %v356
        %1044 = vmatpush1.msra.mxu0 %v355
        %1045 = vmatprep.subr.mxu0 %v352
        %1046 = vmatpush1.msra.mxu0 %v351
        %1047 = vmatprep.subr.mxu0 %v348
        %1048 = vmatpush1.msra.mxu0 %v347
        %1049 = vmatprep.subr.mxu0 %v344
        %1050 = vmatpush1.msra.mxu0 %v343
        %1051 = vmatprep.subr.mxu0 %v340
        %1052 = vmatpush1.msra.mxu0 %v339
        %1053 = vmatprep.subr.mxu0 %v336
        %1054 = vmatpush1.msra.mxu0 %v335
        %1055 = vmatprep.subr.mxu0 %v332
        %1056 = vmatpush1.msra.mxu0 %v331
        %1057 = vmatprep.subr.mxu0 %v328
        %1058 = vmatpush1.msra.mxu0 %v327
        %1059 = vmatprep.subr.mxu0 %v324
        %1060 = vmatpush1.msra.mxu0 %v323
        %1061 = vmatprep.subr.mxu0 %v320
        %1062 = vmatpush1.msra.mxu0 %v319
        %1063 = vmatprep.subr.mxu0 %v316
        %1064 = vmatpush1.msra.mxu0 %v315
        %1065 = vmatprep.subr.mxu0 %v312
        %1066 = vmatpush1.msra.mxu0 %v311
        %1067 = vmatprep.subr.mxu0 %v308
        %1068 = vmatpush1.msra.mxu0 %v307
        %1069 = vmatprep.subr.mxu0 %v304
        %1070 = vmatpush1.msra.mxu0 %v303
        %1071 = vmatprep.subr.mxu0 %v300
        %1072 = vmatpush1.msra.mxu0 %v299
        %1073 = vmatprep.subr.mxu0 %v296
        %1074 = vmatpush1.msra.mxu0 %v295
        %1075 = vmatprep.subr.mxu0 0.0
        %1076 = vmatpush2.msra.mxu0 0.0
        %1077 = vmatprep.subr.mxu0 0.0
        %1078 = vmatpush2.msra.mxu0 0.0
        %1079 = vmatprep.subr.mxu0 0.0
        %1080 = vmatpush2.msra.mxu0 0.0
        %1081 = vmatprep.subr.mxu0 0.0
        %1082 = vmatpush2.msra.mxu0 0.0
        %1083 = vmatprep.subr.mxu0 0.0
        %1084 = vmatpush2.msra.mxu0 0.0
        %1085 = vmatprep.subr.mxu0 0.0
        %1086 = vmatpush2.msra.mxu0 0.0
        %1087 = vmatprep.subr.mxu0 0.0
        %1088 = vmatpush2.msra.mxu0 0.0
        %1089 = vmatprep.subr.mxu0 0.0
        %1090 = vmatpush2.msra.mxu0 0.0
        %1091 = vmatprep.subr.mxu0 0.0
        %1092 = vmatpush2.msra.mxu0 0.0
        %1093 = vmatprep.subr.mxu0 0.0
        %1094 = vmatpush2.msra.mxu0 0.0
        %1095 = vmatprep.subr.mxu0 0.0
        %1096 = vmatpush2.msra.mxu0 0.0
        %1097 = vmatprep.subr.mxu0 0.0
        %1098 = vmatpush2.msra.mxu0 0.0
        %1099 = vmatprep.subr.mxu0 0.0
        %1100 = vmatpush2.msra.mxu0 0.0
        %1101 = vmatprep.subr.mxu0 0.0
        %1102 = vmatpush2.msra.mxu0 0.0
        %1103 = vmatprep.subr.mxu0 0.0
        %1104 = vmatpush2.msra.mxu0 0.0
        %1105 = vmatprep.subr.mxu0 0.0
        %1106 = vmatpush2.msra.mxu0 0.0
        %1107 = vmatprep.mubr.f32.mxu0 0.0
        %v1108 = vand.u32 %v357, 4294901760
        %v1109 = vsub.f32 %v357, %v1108
        %v1110 = vand.u32 %v1109, 4294901760
        %v1111 = vsub.f32 %v1109, %v1110
        %v1112 = vand.u32 %v1111, 4294901760
        %1113 = vmatmul.mubr.f32.gmra.mxu0 %v1112
        %v1114 = vpop.f32.mrf.mxu0
        %v1115 = vadd.f32 %v371, %v1114
        %v1116 = vpop.f32.mrf.mxu0
        %v1117 = vadd.f32 %v375, %v1116
        %1118 = vdwg.mxu0
        %v1119 = vsub.f32 %v356, %v356
        %v1120 = vand.u32 %v1119, 4294901760
        %v1121 = vsub.f32 %v1119, %v1120
        %v1122 = vand.u32 %v1121, 4294901760
        %1123 = vmatprep.subr.mxu0 %v1122
        %v1124 = vsub.f32 %v355, %v355
        %v1125 = vand.u32 %v1124, 4294901760
        %v1126 = vsub.f32 %v1124, %v1125
        %v1127 = vand.u32 %v1126, 4294901760
        %1128 = vmatpush1.msra.mxu0 %v1127
        %v1129 = vsub.f32 %v352, %v352
        %v1130 = vand.u32 %v1129, 4294901760
        %v1131 = vsub.f32 %v1129, %v1130
        %v1132 = vand.u32 %v1131, 4294901760
        %1133 = vmatprep.subr.mxu0 %v1132
        %v1134 = vsub.f32 %v351, %v351
        %v1135 = vand.u32 %v1134, 4294901760
        %v1136 = vsub.f32 %v1134, %v1135
        %v1137 = vand.u32 %v1136, 4294901760
        %1138 = vmatpush1.msra.mxu0 %v1137
        %v1139 = vsub.f32 %v348, %v348
        %v1140 = vand.u32 %v1139, 4294901760
        %v1141 = vsub.f32 %v1139, %v1140
        %v1142 = vand.u32 %v1141, 4294901760
        %1143 = vmatprep.subr.mxu0 %v1142
        %v1144 = vsub.f32 %v347, %v347
        %v1145 = vand.u32 %v1144, 4294901760
        %v1146 = vsub.f32 %v1144, %v1145
        %v1147 = vand.u32 %v1146, 4294901760
        %1148 = vmatpush1.msra.mxu0 %v1147
        %v1149 = vsub.f32 %v344, %v344
        %v1150 = vand.u32 %v1149, 4294901760
        %v1151 = vsub.f32 %v1149, %v1150
        %v1152 = vand.u32 %v1151, 4294901760
        %1153 = vmatprep.subr.mxu0 %v1152
        %v1154 = vsub.f32 %v343, %v343
        %v1155 = vand.u32 %v1154, 4294901760
        %v1156 = vsub.f32 %v1154, %v1155
        %v1157 = vand.u32 %v1156, 4294901760
        %1158 = vmatpush1.msra.mxu0 %v1157
        %v1159 = vsub.f32 %v340, %v340
        %v1160 = vand.u32 %v1159, 4294901760
        %v1161 = vsub.f32 %v1159, %v1160
        %v1162 = vand.u32 %v1161, 4294901760
        %1163 = vmatprep.subr.mxu0 %v1162
        %v1164 = vsub.f32 %v339, %v339
        %v1165 = vand.u32 %v1164, 4294901760
        %v1166 = vsub.f32 %v1164, %v1165
        %v1167 = vand.u32 %v1166, 4294901760
        %1168 = vmatpush1.msra.mxu0 %v1167
        %v1169 = vsub.f32 %v336, %v336
        %v1170 = vand.u32 %v1169, 4294901760
        %v1171 = vsub.f32 %v1169, %v1170
        %v1172 = vand.u32 %v1171, 4294901760
        %1173 = vmatprep.subr.mxu0 %v1172
        %v1174 = vsub.f32 %v335, %v335
        %v1175 = vand.u32 %v1174, 4294901760
        %v1176 = vsub.f32 %v1174, %v1175
        %v1177 = vand.u32 %v1176, 4294901760
        %1178 = vmatpush1.msra.mxu0 %v1177
        %v1179 = vsub.f32 %v332, %v332
        %v1180 = vand.u32 %v1179, 4294901760
        %v1181 = vsub.f32 %v1179, %v1180
        %v1182 = vand.u32 %v1181, 4294901760
        %1183 = vmatprep.subr.mxu0 %v1182
        %v1184 = vsub.f32 %v331, %v331
        %v1185 = vand.u32 %v1184, 4294901760
        %v1186 = vsub.f32 %v1184, %v1185
        %v1187 = vand.u32 %v1186, 4294901760
        %1188 = vmatpush1.msra.mxu0 %v1187
        %v1189 = vsub.f32 %v328, %v328
        %v1190 = vand.u32 %v1189, 4294901760
        %v1191 = vsub.f32 %v1189, %v1190
        %v1192 = vand.u32 %v1191, 4294901760
        %1193 = vmatprep.subr.mxu0 %v1192
        %v1194 = vsub.f32 %v327, %v327
        %v1195 = vand.u32 %v1194, 4294901760
        %v1196 = vsub.f32 %v1194, %v1195
        %v1197 = vand.u32 %v1196, 4294901760
        %1198 = vmatpush1.msra.mxu0 %v1197
        %v1199 = vsub.f32 %v324, %v324
        %v1200 = vand.u32 %v1199, 4294901760
        %v1201 = vsub.f32 %v1199, %v1200
        %v1202 = vand.u32 %v1201, 4294901760
        %1203 = vmatprep.subr.mxu0 %v1202
        %v1204 = vsub.f32 %v323, %v323
        %v1205 = vand.u32 %v1204, 4294901760
        %v1206 = vsub.f32 %v1204, %v1205
        %v1207 = vand.u32 %v1206, 4294901760
        %1208 = vmatpush1.msra.mxu0 %v1207
        %v1209 = vsub.f32 %v320, %v320
        %v1210 = vand.u32 %v1209, 4294901760
        %v1211 = vsub.f32 %v1209, %v1210
        %v1212 = vand.u32 %v1211, 4294901760
        %1213 = vmatprep.subr.mxu0 %v1212
        %v1214 = vsub.f32 %v319, %v319
        %v1215 = vand.u32 %v1214, 4294901760
        %v1216 = vsub.f32 %v1214, %v1215
        %v1217 = vand.u32 %v1216, 4294901760
        %1218 = vmatpush1.msra.mxu0 %v1217
        %v1219 = vsub.f32 %v316, %v316
        %v1220 = vand.u32 %v1219, 4294901760
        %v1221 = vsub.f32 %v1219, %v1220
        %v1222 = vand.u32 %v1221, 4294901760
        %1223 = vmatprep.subr.mxu0 %v1222
        %v1224 = vsub.f32 %v315, %v315
        %v1225 = vand.u32 %v1224, 4294901760
        %v1226 = vsub.f32 %v1224, %v1225
        %v1227 = vand.u32 %v1226, 4294901760
        %1228 = vmatpush1.msra.mxu0 %v1227
        %v1229 = vsub.f32 %v312, %v312
        %v1230 = vand.u32 %v1229, 4294901760
        %v1231 = vsub.f32 %v1229, %v1230
        %v1232 = vand.u32 %v1231, 4294901760
        %1233 = vmatprep.subr.mxu0 %v1232
        %v1234 = vsub.f32 %v311, %v311
        %v1235 = vand.u32 %v1234, 4294901760
        %v1236 = vsub.f32 %v1234, %v1235
        %v1237 = vand.u32 %v1236, 4294901760
        %1238 = vmatpush1.msra.mxu0 %v1237
        %v1239 = vsub.f32 %v308, %v308
        %v1240 = vand.u32 %v1239, 4294901760
        %v1241 = vsub.f32 %v1239, %v1240
        %v1242 = vand.u32 %v1241, 4294901760
        %1243 = vmatprep.subr.mxu0 %v1242
        %v1244 = vsub.f32 %v307, %v307
        %v1245 = vand.u32 %v1244, 4294901760
        %v1246 = vsub.f32 %v1244, %v1245
        %v1247 = vand.u32 %v1246, 4294901760
        %1248 = vmatpush1.msra.mxu0 %v1247
        %v1249 = vsub.f32 %v304, %v304
        %v1250 = vand.u32 %v1249, 4294901760
        %v1251 = vsub.f32 %v1249, %v1250
        %v1252 = vand.u32 %v1251, 4294901760
        %1253 = vmatprep.subr.mxu0 %v1252
        %v1254 = vsub.f32 %v303, %v303
        %v1255 = vand.u32 %v1254, 4294901760
        %v1256 = vsub.f32 %v1254, %v1255
        %v1257 = vand.u32 %v1256, 4294901760
        %1258 = vmatpush1.msra.mxu0 %v1257
        %v1259 = vsub.f32 %v300, %v300
        %v1260 = vand.u32 %v1259, 4294901760
        %v1261 = vsub.f32 %v1259, %v1260
        %v1262 = vand.u32 %v1261, 4294901760
        %1263 = vmatprep.subr.mxu0 %v1262
        %v1264 = vsub.f32 %v299, %v299
        %v1265 = vand.u32 %v1264, 4294901760
        %v1266 = vsub.f32 %v1264, %v1265
        %v1267 = vand.u32 %v1266, 4294901760
        %1268 = vmatpush1.msra.mxu0 %v1267
        %v1269 = vsub.f32 %v296, %v296
        %v1270 = vand.u32 %v1269, 4294901760
        %v1271 = vsub.f32 %v1269, %v1270
        %v1272 = vand.u32 %v1271, 4294901760
        %1273 = vmatprep.subr.mxu0 %v1272
        %v1274 = vsub.f32 %v295, %v295
        %v1275 = vand.u32 %v1274, 4294901760
        %v1276 = vsub.f32 %v1274, %v1275
        %v1277 = vand.u32 %v1276, 4294901760
        %1278 = vmatpush1.msra.mxu0 %v1277
        %1279 = vmatprep.subr.mxu0 0.0
        %1280 = vmatpush2.msra.mxu0 0.0
        %1281 = vmatprep.subr.mxu0 0.0
        %1282 = vmatpush2.msra.mxu0 0.0
        %1283 = vmatprep.subr.mxu0 0.0
        %1284 = vmatpush2.msra.mxu0 0.0
        %1285 = vmatprep.subr.mxu0 0.0
        %1286 = vmatpush2.msra.mxu0 0.0
        %1287 = vmatprep.subr.mxu0 0.0
        %1288 = vmatpush2.msra.mxu0 0.0
        %1289 = vmatprep.subr.mxu0 0.0
        %1290 = vmatpush2.msra.mxu0 0.0
        %1291 = vmatprep.subr.mxu0 0.0
        %1292 = vmatpush2.msra.mxu0 0.0
        %1293 = vmatprep.subr.mxu0 0.0
        %1294 = vmatpush2.msra.mxu0 0.0
        %1295 = vmatprep.subr.mxu0 0.0
        %1296 = vmatpush2.msra.mxu0 0.0
        %1297 = vmatprep.subr.mxu0 0.0
        %1298 = vmatpush2.msra.mxu0 0.0
        %1299 = vmatprep.subr.mxu0 0.0
        %1300 = vmatpush2.msra.mxu0 0.0
        %1301 = vmatprep.subr.mxu0 0.0
        %1302 = vmatpush2.msra.mxu0 0.0
        %1303 = vmatprep.subr.mxu0 0.0
        %1304 = vmatpush2.msra.mxu0 0.0
        %1305 = vmatprep.subr.mxu0 0.0
        %1306 = vmatpush2.msra.mxu0 0.0
        %1307 = vmatprep.subr.mxu0 0.0
        %1308 = vmatpush2.msra.mxu0 0.0
        %1309 = vmatprep.subr.mxu0 0.0
        %1310 = vmatpush2.msra.mxu0 0.0
        %1311 = vmatprep.mubr.f32.mxu0 0.0
        %v1312 = vand.u32 %v357, 4294901760
        %1313 = vmatmul.mubr.f32.gmra.mxu0 %v1312
        %v1314 = vpop.f32.mrf.mxu0
        %v1315 = vadd.f32 %v1115, %v1314
        %v1316 = vpop.f32.mrf.mxu0
        %v1317 = vadd.f32 %v1117, %v1316
        %1318 = vdwg.mxu0
        %v1319 = vsub.f32 %v356, %v356
        %1320 = vmatprep.subr.mxu0 %v1319
        %v1321 = vsub.f32 %v355, %v355
        %1322 = vmatpush1.msra.mxu0 %v1321
        %v1323 = vsub.f32 %v352, %v352
        %1324 = vmatprep.subr.mxu0 %v1323
        %v1325 = vsub.f32 %v351, %v351
        %1326 = vmatpush1.msra.mxu0 %v1325
        %v1327 = vsub.f32 %v348, %v348
        %1328 = vmatprep.subr.mxu0 %v1327
        %v1329 = vsub.f32 %v347, %v347
        %1330 = vmatpush1.msra.mxu0 %v1329
        %v1331 = vsub.f32 %v344, %v344
        %1332 = vmatprep.subr.mxu0 %v1331
        %v1333 = vsub.f32 %v343, %v343
        %1334 = vmatpush1.msra.mxu0 %v1333
        %v1335 = vsub.f32 %v340, %v340
        %1336 = vmatprep.subr.mxu0 %v1335
        %v1337 = vsub.f32 %v339, %v339
        %1338 = vmatpush1.msra.mxu0 %v1337
        %v1339 = vsub.f32 %v336, %v336
        %1340 = vmatprep.subr.mxu0 %v1339
        %v1341 = vsub.f32 %v335, %v335
        %1342 = vmatpush1.msra.mxu0 %v1341
        %v1343 = vsub.f32 %v332, %v332
        %1344 = vmatprep.subr.mxu0 %v1343
        %v1345 = vsub.f32 %v331, %v331
        %1346 = vmatpush1.msra.mxu0 %v1345
        %v1347 = vsub.f32 %v328, %v328
        %1348 = vmatprep.subr.mxu0 %v1347
        %v1349 = vsub.f32 %v327, %v327
        %1350 = vmatpush1.msra.mxu0 %v1349
        %v1351 = vsub.f32 %v324, %v324
        %1352 = vmatprep.subr.mxu0 %v1351
        %v1353 = vsub.f32 %v323, %v323
        %1354 = vmatpush1.msra.mxu0 %v1353
        %v1355 = vsub.f32 %v320, %v320
        %1356 = vmatprep.subr.mxu0 %v1355
        %v1357 = vsub.f32 %v319, %v319
        %1358 = vmatpush1.msra.mxu0 %v1357
        %v1359 = vsub.f32 %v316, %v316
        %1360 = vmatprep.subr.mxu0 %v1359
        %v1361 = vsub.f32 %v315, %v315
        %1362 = vmatpush1.msra.mxu0 %v1361
        %v1363 = vsub.f32 %v312, %v312
        %1364 = vmatprep.subr.mxu0 %v1363
        %v1365 = vsub.f32 %v311, %v311
        %1366 = vmatpush1.msra.mxu0 %v1365
        %v1367 = vsub.f32 %v308, %v308
        %1368 = vmatprep.subr.mxu0 %v1367
        %v1369 = vsub.f32 %v307, %v307
        %1370 = vmatpush1.msra.mxu0 %v1369
        %v1371 = vsub.f32 %v304, %v304
        %1372 = vmatprep.subr.mxu0 %v1371
        %v1373 = vsub.f32 %v303, %v303
        %1374 = vmatpush1.msra.mxu0 %v1373
        %v1375 = vsub.f32 %v300, %v300
        %1376 = vmatprep.subr.mxu0 %v1375
        %v1377 = vsub.f32 %v299, %v299
        %1378 = vmatpush1.msra.mxu0 %v1377
        %v1379 = vsub.f32 %v296, %v296
        %1380 = vmatprep.subr.mxu0 %v1379
        %v1381 = vsub.f32 %v295, %v295
        %1382 = vmatpush1.msra.mxu0 %v1381
        %1383 = vmatprep.subr.mxu0 0.0
        %1384 = vmatpush2.msra.mxu0 0.0
        %1385 = vmatprep.subr.mxu0 0.0
        %1386 = vmatpush2.msra.mxu0 0.0
        %1387 = vmatprep.subr.mxu0 0.0
        %1388 = vmatpush2.msra.mxu0 0.0
        %1389 = vmatprep.subr.mxu0 0.0
        %1390 = vmatpush2.msra.mxu0 0.0
        %1391 = vmatprep.subr.mxu0 0.0
        %1392 = vmatpush2.msra.mxu0 0.0
        %1393 = vmatprep.subr.mxu0 0.0
        %1394 = vmatpush2.msra.mxu0 0.0
        %1395 = vmatprep.subr.mxu0 0.0
        %1396 = vmatpush2.msra.mxu0 0.0
        %1397 = vmatprep.subr.mxu0 0.0
        %1398 = vmatpush2.msra.mxu0 0.0
        %1399 = vmatprep.subr.mxu0 0.0
        %1400 = vmatpush2.msra.mxu0 0.0
        %1401 = vmatprep.subr.mxu0 0.0
        %1402 = vmatpush2.msra.mxu0 0.0
        %1403 = vmatprep.subr.mxu0 0.0
        %1404 = vmatpush2.msra.mxu0 0.0
        %1405 = vmatprep.subr.mxu0 0.0
        %1406 = vmatpush2.msra.mxu0 0.0
        %1407 = vmatprep.subr.mxu0 0.0
        %1408 = vmatpush2.msra.mxu0 0.0
        %1409 = vmatprep.subr.mxu0 0.0
        %1410 = vmatpush2.msra.mxu0 0.0
        %1411 = vmatprep.subr.mxu0 0.0
        %1412 = vmatpush2.msra.mxu0 0.0
        %1413 = vmatprep.subr.mxu0 0.0
        %1414 = vmatpush2.msra.mxu0 0.0
        %1415 = vmatprep.mubr.f32.mxu0 0.0
        %v1416 = vand.u32 %v357, 4294901760
        %v1417 = vsub.f32 %v357, %v1416
        %1418 = vmatmul.mubr.f32.gmra.mxu0 %v1417
        %v1419 = vpop.f32.mrf.mxu0
        %v1420 = vadd.f32 %v1315, %v1419
        %v1421 = vpop.f32.mrf.mxu0
        %v1422 = vadd.f32 %v1317, %v1421
        %1423 = vdwg.mxu0
        %1424 = vmatprep.subr.mxu0 %v356
        %1425 = vmatpush1.msra.mxu0 %v355
        %1426 = vmatprep.subr.mxu0 %v352
        %1427 = vmatpush1.msra.mxu0 %v351
        %1428 = vmatprep.subr.mxu0 %v348
        %1429 = vmatpush1.msra.mxu0 %v347
        %1430 = vmatprep.subr.mxu0 %v344
        %1431 = vmatpush1.msra.mxu0 %v343
        %1432 = vmatprep.subr.mxu0 %v340
        %1433 = vmatpush1.msra.mxu0 %v339
        %1434 = vmatprep.subr.mxu0 %v336
        %1435 = vmatpush1.msra.mxu0 %v335
        %1436 = vmatprep.subr.mxu0 %v332
        %1437 = vmatpush1.msra.mxu0 %v331
        %1438 = vmatprep.subr.mxu0 %v328
        %1439 = vmatpush1.msra.mxu0 %v327
        %1440 = vmatprep.subr.mxu0 %v324
        %1441 = vmatpush1.msra.mxu0 %v323
        %1442 = vmatprep.subr.mxu0 %v320
        %1443 = vmatpush1.msra.mxu0 %v319
        %1444 = vmatprep.subr.mxu0 %v316
        %1445 = vmatpush1.msra.mxu0 %v315
        %1446 = vmatprep.subr.mxu0 %v312
        %1447 = vmatpush1.msra.mxu0 %v311
        %1448 = vmatprep.subr.mxu0 %v308
        %1449 = vmatpush1.msra.mxu0 %v307
        %1450 = vmatprep.subr.mxu0 %v304
        %1451 = vmatpush1.msra.mxu0 %v303
        %1452 = vmatprep.subr.mxu0 %v300
        %1453 = vmatpush1.msra.mxu0 %v299
        %1454 = vmatprep.subr.mxu0 %v296
        %1455 = vmatpush1.msra.mxu0 %v295
        %1456 = vmatprep.subr.mxu0 0.0
        %1457 = vmatpush2.msra.mxu0 0.0
        %1458 = vmatprep.subr.mxu0 0.0
        %1459 = vmatpush2.msra.mxu0 0.0
        %1460 = vmatprep.subr.mxu0 0.0
        %1461 = vmatpush2.msra.mxu0 0.0
        %1462 = vmatprep.subr.mxu0 0.0
        %1463 = vmatpush2.msra.mxu0 0.0
        %1464 = vmatprep.subr.mxu0 0.0
        %1465 = vmatpush2.msra.mxu0 0.0
        %1466 = vmatprep.subr.mxu0 0.0
        %1467 = vmatpush2.msra.mxu0 0.0
        %1468 = vmatprep.subr.mxu0 0.0
        %1469 = vmatpush2.msra.mxu0 0.0
        %1470 = vmatprep.subr.mxu0 0.0
        %1471 = vmatpush2.msra.mxu0 0.0
        %1472 = vmatprep.subr.mxu0 0.0
        %1473 = vmatpush2.msra.mxu0 0.0
        %1474 = vmatprep.subr.mxu0 0.0
        %1475 = vmatpush2.msra.mxu0 0.0
        %1476 = vmatprep.subr.mxu0 0.0
        %1477 = vmatpush2.msra.mxu0 0.0
        %1478 = vmatprep.subr.mxu0 0.0
        %1479 = vmatpush2.msra.mxu0 0.0
        %1480 = vmatprep.subr.mxu0 0.0
        %1481 = vmatpush2.msra.mxu0 0.0
        %1482 = vmatprep.subr.mxu0 0.0
        %1483 = vmatpush2.msra.mxu0 0.0
        %1484 = vmatprep.subr.mxu0 0.0
        %1485 = vmatpush2.msra.mxu0 0.0
        %1486 = vmatprep.subr.mxu0 0.0
        %1487 = vmatpush2.msra.mxu0 0.0
        %1488 = vmatprep.mubr.f32.mxu0 0.0
        %v1489 = vand.u32 %v357, 4294901760
        %v1490 = vsub.f32 %v357, %v1489
        %v1491 = vand.u32 %v1490, 4294901760
        %1492 = vmatmul.mubr.f32.gmra.mxu0 %v1491
        %v1493 = vpop.f32.mrf.mxu0
        %v1494 = vadd.f32 %v1420, %v1493
        %v1495 = vpop.f32.mrf.mxu0
        %v1496 = vadd.f32 %v1422, %v1495
        %1497 = vdwg.mxu0
        %v1498 = vsub.f32 %v356, %v356
        %v1499 = vand.u32 %v1498, 4294901760
        %1500 = vmatprep.subr.mxu0 %v1499
        %v1501 = vsub.f32 %v355, %v355
        %v1502 = vand.u32 %v1501, 4294901760
        %1503 = vmatpush1.msra.mxu0 %v1502
        %v1504 = vsub.f32 %v352, %v352
        %v1505 = vand.u32 %v1504, 4294901760
        %1506 = vmatprep.subr.mxu0 %v1505
        %v1507 = vsub.f32 %v351, %v351
        %v1508 = vand.u32 %v1507, 4294901760
        %1509 = vmatpush1.msra.mxu0 %v1508
        %v1510 = vsub.f32 %v348, %v348
        %v1511 = vand.u32 %v1510, 4294901760
        %1512 = vmatprep.subr.mxu0 %v1511
        %v1513 = vsub.f32 %v347, %v347
        %v1514 = vand.u32 %v1513, 4294901760
        %1515 = vmatpush1.msra.mxu0 %v1514
        %v1516 = vsub.f32 %v344, %v344
        %v1517 = vand.u32 %v1516, 4294901760
        %1518 = vmatprep.subr.mxu0 %v1517
        %v1519 = vsub.f32 %v343, %v343
        %v1520 = vand.u32 %v1519, 4294901760
        %1521 = vmatpush1.msra.mxu0 %v1520
        %v1522 = vsub.f32 %v340, %v340
        %v1523 = vand.u32 %v1522, 4294901760
        %1524 = vmatprep.subr.mxu0 %v1523
        %v1525 = vsub.f32 %v339, %v339
        %v1526 = vand.u32 %v1525, 4294901760
        %1527 = vmatpush1.msra.mxu0 %v1526
        %v1528 = vsub.f32 %v336, %v336
        %v1529 = vand.u32 %v1528, 4294901760
        %1530 = vmatprep.subr.mxu0 %v1529
        %v1531 = vsub.f32 %v335, %v335
        %v1532 = vand.u32 %v1531, 4294901760
        %1533 = vmatpush1.msra.mxu0 %v1532
        %v1534 = vsub.f32 %v332, %v332
        %v1535 = vand.u32 %v1534, 4294901760
        %1536 = vmatprep.subr.mxu0 %v1535
        %v1537 = vsub.f32 %v331, %v331
        %v1538 = vand.u32 %v1537, 4294901760
        %1539 = vmatpush1.msra.mxu0 %v1538
        %v1540 = vsub.f32 %v328, %v328
        %v1541 = vand.u32 %v1540, 4294901760
        %1542 = vmatprep.subr.mxu0 %v1541
        %v1543 = vsub.f32 %v327, %v327
        %v1544 = vand.u32 %v1543, 4294901760
        %1545 = vmatpush1.msra.mxu0 %v1544
        %v1546 = vsub.f32 %v324, %v324
        %v1547 = vand.u32 %v1546, 4294901760
        %1548 = vmatprep.subr.mxu0 %v1547
        %v1549 = vsub.f32 %v323, %v323
        %v1550 = vand.u32 %v1549, 4294901760
        %1551 = vmatpush1.msra.mxu0 %v1550
        %v1552 = vsub.f32 %v320, %v320
        %v1553 = vand.u32 %v1552, 4294901760
        %1554 = vmatprep.subr.mxu0 %v1553
        %v1555 = vsub.f32 %v319, %v319
        %v1556 = vand.u32 %v1555, 4294901760
        %1557 = vmatpush1.msra.mxu0 %v1556
        %v1558 = vsub.f32 %v316, %v316
        %v1559 = vand.u32 %v1558, 4294901760
        %1560 = vmatprep.subr.mxu0 %v1559
        %v1561 = vsub.f32 %v315, %v315
        %v1562 = vand.u32 %v1561, 4294901760
        %1563 = vmatpush1.msra.mxu0 %v1562
        %v1564 = vsub.f32 %v312, %v312
        %v1565 = vand.u32 %v1564, 4294901760
        %1566 = vmatprep.subr.mxu0 %v1565
        %v1567 = vsub.f32 %v311, %v311
        %v1568 = vand.u32 %v1567, 4294901760
        %1569 = vmatpush1.msra.mxu0 %v1568
        %v1570 = vsub.f32 %v308, %v308
        %v1571 = vand.u32 %v1570, 4294901760
        %1572 = vmatprep.subr.mxu0 %v1571
        %v1573 = vsub.f32 %v307, %v307
        %v1574 = vand.u32 %v1573, 4294901760
        %1575 = vmatpush1.msra.mxu0 %v1574
        %v1576 = vsub.f32 %v304, %v304
        %v1577 = vand.u32 %v1576, 4294901760
        %1578 = vmatprep.subr.mxu0 %v1577
        %v1579 = vsub.f32 %v303, %v303
        %v1580 = vand.u32 %v1579, 4294901760
        %1581 = vmatpush1.msra.mxu0 %v1580
        %v1582 = vsub.f32 %v300, %v300
        %v1583 = vand.u32 %v1582, 4294901760
        %1584 = vmatprep.subr.mxu0 %v1583
        %v1585 = vsub.f32 %v299, %v299
        %v1586 = vand.u32 %v1585, 4294901760
        %1587 = vmatpush1.msra.mxu0 %v1586
        %v1588 = vsub.f32 %v296, %v296
        %v1589 = vand.u32 %v1588, 4294901760
        %1590 = vmatprep.subr.mxu0 %v1589
        %v1591 = vsub.f32 %v295, %v295
        %v1592 = vand.u32 %v1591, 4294901760
        %1593 = vmatpush1.msra.mxu0 %v1592
        %1594 = vmatprep.subr.mxu0 0.0
        %1595 = vmatpush2.msra.mxu0 0.0
        %1596 = vmatprep.subr.mxu0 0.0
        %1597 = vmatpush2.msra.mxu0 0.0
        %1598 = vmatprep.subr.mxu0 0.0
        %1599 = vmatpush2.msra.mxu0 0.0
        %1600 = vmatprep.subr.mxu0 0.0
        %1601 = vmatpush2.msra.mxu0 0.0
        %1602 = vmatprep.subr.mxu0 0.0
        %1603 = vmatpush2.msra.mxu0 0.0
        %1604 = vmatprep.subr.mxu0 0.0
        %1605 = vmatpush2.msra.mxu0 0.0
        %1606 = vmatprep.subr.mxu0 0.0
        %1607 = vmatpush2.msra.mxu0 0.0
        %1608 = vmatprep.subr.mxu0 0.0
        %1609 = vmatpush2.msra.mxu0 0.0
        %1610 = vmatprep.subr.mxu0 0.0
        %1611 = vmatpush2.msra.mxu0 0.0
        %1612 = vmatprep.subr.mxu0 0.0
        %1613 = vmatpush2.msra.mxu0 0.0
        %1614 = vmatprep.subr.mxu0 0.0
        %1615 = vmatpush2.msra.mxu0 0.0
        %1616 = vmatprep.subr.mxu0 0.0
        %1617 = vmatpush2.msra.mxu0 0.0
        %1618 = vmatprep.subr.mxu0 0.0
        %1619 = vmatpush2.msra.mxu0 0.0
        %1620 = vmatprep.subr.mxu0 0.0
        %1621 = vmatpush2.msra.mxu0 0.0
        %1622 = vmatprep.subr.mxu0 0.0
        %1623 = vmatpush2.msra.mxu0 0.0
        %1624 = vmatprep.subr.mxu0 0.0
        %1625 = vmatpush2.msra.mxu0 0.0
        %1626 = vmatprep.mubr.f32.mxu0 0.0
        %v1627 = vand.u32 %v357, 4294901760
        %1628 = vmatmul.mubr.f32.gmra.mxu0 %v1627
        %v1629 = vpop.f32.mrf.mxu0
        %v1630 = vadd.f32 %v1494, %v1629
        %v1631 = vpop.f32.mrf.mxu0
        %v1632 = vadd.f32 %v1496, %v1631
        %1633 = vdwg.mxu0
        %1634 = vmatprep.subr.mxu0 %v356
        %1635 = vmatpush1.msra.mxu0 %v355
        %1636 = vmatprep.subr.mxu0 %v352
        %1637 = vmatpush1.msra.mxu0 %v351
        %1638 = vmatprep.subr.mxu0 %v348
        %1639 = vmatpush1.msra.mxu0 %v347
        %1640 = vmatprep.subr.mxu0 %v344
        %1641 = vmatpush1.msra.mxu0 %v343
        %1642 = vmatprep.subr.mxu0 %v340
        %1643 = vmatpush1.msra.mxu0 %v339
        %1644 = vmatprep.subr.mxu0 %v336
        %1645 = vmatpush1.msra.mxu0 %v335
        %1646 = vmatprep.subr.mxu0 %v332
        %1647 = vmatpush1.msra.mxu0 %v331
        %1648 = vmatprep.subr.mxu0 %v328
        %1649 = vmatpush1.msra.mxu0 %v327
        %1650 = vmatprep.subr.mxu0 %v324
        %1651 = vmatpush1.msra.mxu0 %v323
        %1652 = vmatprep.subr.mxu0 %v320
        %1653 = vmatpush1.msra.mxu0 %v319
        %1654 = vmatprep.subr.mxu0 %v316
        %1655 = vmatpush1.msra.mxu0 %v315
        %1656 = vmatprep.subr.mxu0 %v312
        %1657 = vmatpush1.msra.mxu0 %v311
        %1658 = vmatprep.subr.mxu0 %v308
        %1659 = vmatpush1.msra.mxu0 %v307
        %1660 = vmatprep.subr.mxu0 %v304
        %1661 = vmatpush1.msra.mxu0 %v303
        %1662 = vmatprep.subr.mxu0 %v300
        %1663 = vmatpush1.msra.mxu0 %v299
        %1664 = vmatprep.subr.mxu0 %v296
        %1665 = vmatpush1.msra.mxu0 %v295
        %1666 = vmatprep.subr.mxu0 0.0
        %1667 = vmatpush2.msra.mxu0 0.0
        %1668 = vmatprep.subr.mxu0 0.0
        %1669 = vmatpush2.msra.mxu0 0.0
        %1670 = vmatprep.subr.mxu0 0.0
        %1671 = vmatpush2.msra.mxu0 0.0
        %1672 = vmatprep.subr.mxu0 0.0
        %1673 = vmatpush2.msra.mxu0 0.0
        %1674 = vmatprep.subr.mxu0 0.0
        %1675 = vmatpush2.msra.mxu0 0.0
        %1676 = vmatprep.subr.mxu0 0.0
        %1677 = vmatpush2.msra.mxu0 0.0
        %1678 = vmatprep.subr.mxu0 0.0
        %1679 = vmatpush2.msra.mxu0 0.0
        %1680 = vmatprep.subr.mxu0 0.0
        %1681 = vmatpush2.msra.mxu0 0.0
        %1682 = vmatprep.subr.mxu0 0.0
        %1683 = vmatpush2.msra.mxu0 0.0
        %1684 = vmatprep.subr.mxu0 0.0
        %1685 = vmatpush2.msra.mxu0 0.0
        %1686 = vmatprep.subr.mxu0 0.0
        %1687 = vmatpush2.msra.mxu0 0.0
        %1688 = vmatprep.subr.mxu0 0.0
        %1689 = vmatpush2.msra.mxu0 0.0
        %1690 = vmatprep.subr.mxu0 0.0
        %1691 = vmatpush2.msra.mxu0 0.0
        %1692 = vmatprep.subr.mxu0 0.0
        %1693 = vmatpush2.msra.mxu0 0.0
        %1694 = vmatprep.subr.mxu0 0.0
        %1695 = vmatpush2.msra.mxu0 0.0
        %1696 = vmatprep.subr.mxu0 0.0
        %1697 = vmatpush2.msra.mxu0 0.0
        %1698 = vmatprep.mubr.f32.mxu0 0.0
        %v1699 = vand.u32 %v357, 4294901760
        %1700 = vmatmul.mubr.f32.gmra.mxu0 %v1699
        %v1701 = vpop.f32.mrf.mxu0
        %v1702 = vadd.f32 %v1630, %v1701
        %v1703 = vpop.f32.mrf.mxu0
        %v1704 = vadd.f32 %v1632, %v1703
        %1705 = vdwg.mxu0
        %v1706 = vmax.f32 %v1039, 0.0
        %v1707 = vmax.f32 %v1041, 0.0
        %v1708 = vmax.f32 %v1702, 0.0
        %v1709 = vmax.f32 %v1704, 0.0
        %1710 = vst [vmem:[%s257] sm:$0xff] %v1706
        %1711 = vst [vmem:[%s257 + $0x8] sm:$0xff] %v1707
        %1712 = vst [vmem:[%s257 + $0x10] sm:$0xff] %v1708
        %1713 = vst [vmem:[%s257 + $0x18] sm:$0xff] %v1709
        %s1714 = sand.u32 %s121, 1
        %s1715 = scalar_lea.sflag [#allocation4], %s1714
        %s1716 = sand.u32 %s121, 1
        %s1717 = smul.addr %s1716, 32
        %s1718 = scalar_lea.vmem [#allocation8], %s1717
        // Predicated region
        $region45: #{_linear_relu_padded.1} parent=31 // pred_check
          %p1719 = pneg %p131
        $region46: #{_linear_relu_padded.1} parent=31 // pred_check_branch
          %1721 = sbr.rel (%p1719) target = $region48
        $region47: #{_linear_relu_padded.1} parent=31 // pred_region
          %s1722 = smul.u32 4, %s25
          %s1724 = ssub.s32 512, 512
          %1725 = vsyncadd %s1715, %s1724
          %s1726 = smul.addr %s26, 8
          %s1727 = sadd.s32 %s1722, %s1726
          %s1728 = smul.addr %s1727, 128
          %s1729 = scalar_lea.hbm %s3, %s1728
          %s1731 = sshll.u32 %s1718, 4
          %s1732 = int_to_ptr.vmem [resolvable:$true] %s1731
          %1734 = dma.vmem_to_hbm [thread:$0]  %s1732, 512, %s1729, %s1715
        $region48: #{_linear_relu_padded.1} parent=31 // pred_fallthru
          _
      $region32: #{_linear_relu_padded.1} parent=5 // pred_fallthru
        _
      %p1735 = scmp.le.s32.totalorder 2, %s16
      // Predicated region
      $region49: #{_linear_relu_padded.1} parent=5 // pred_check
        %p1736 = pneg %p1735
      $region50: #{_linear_relu_padded.1} parent=5 // pred_check_branch
        %1738 = sbr.rel (%p1736) target = $region52
      $region51: #{_linear_relu_padded.1} parent=5 // pred_region
        %s1739 = ssub.s32 %s16, 2
        // Predicated region
        $region53: #{_linear_relu_padded.1} parent=51 // pred_check
          %p1740 = pneg %p137
        $region54: #{_linear_relu_padded.1} parent=51 // pred_check_branch
          %1742 = sbr.rel (%p1740) target = $region56
        $region55: #{_linear_relu_padded.1} parent=51 // pred_region
          %s1743 = sand.u32 %s122, 1
          %s1744 = scalar_lea.sflag [#allocation4], %s1743
          %s1745 = sand.u32 %s122, 1
          %s1746 = smul.addr %s1745, 32
          %s1747 = scalar_lea.vmem [#allocation8], %s1746
          %1748 = dma.done %s1744, 512
        $region56: #{_linear_relu_padded.1} parent=51 // pred_fallthru
          _
      $region52: #{_linear_relu_padded.1} parent=5 // pred_fallthru
        _
    $region6: #{_linear_relu_padded.1} parent=1 // loop_footer
      %s20 = sadd.s32 1, %s16
    $region7: #{_linear_relu_padded.1} parent=1 // loop_footer_branch
      %15 = sbr.rel target = $region3
    $region8: #{_linear_relu_padded.1} parent=1 // loop_exit
      _
    %1749 = vsyncpa [#allocation3], 1
    %s1750 = scalar_lea.sflag [#allocation3], 1
    %1751 = vsyncpa %s1750, 1
    %1752 = vsyncpa [#allocation6], 1
    %s1753 = scalar_lea.sflag [#allocation6], 1
    %1754 = vsyncpa %s1753, 1
    %1755 = vsyncpa [#allocation4], 1
    %s1756 = scalar_lea.sflag [#allocation4], 1
    %1757 = vsyncpa %s1756, 1

</llo_original>
